<compile_context>
chip_gen: v7x
topology: tpu7x:2x2x1
jax: 0.10.0
libtpu: 0.0.40
codegen_flags: <defaults>
</compile_context>

<pallas_src>
import math

import jax
import jax.numpy as jnp
import numpy as np
from jax.experimental import pallas as pl
from jax.experimental.pallas import tpu as pltpu

# ---------------------------------------------------------------------------
# model dims (small, consistent with the module's __init__)
# ---------------------------------------------------------------------------
B = 2          # batch
S = 8          # sequence length
D = 32         # d_model
H = 4          # num_heads
DK = D // H    # head dim
DFF = 64       # d_ff
N = B * S      # flattened rows (batch folded into sublanes)
LN_EPS = 1e-6
NEG_INF = -1e9


def _layernorm(v, gamma, beta):
    mu = jnp.mean(v, axis=-1, keepdims=True)
    var = jnp.mean((v - mu) ** 2, axis=-1, keepdims=True)
    return gamma * (v - mu) * jax.lax.rsqrt(var + LN_EPS) + beta


# ---------------------------------------------------------------------------
# Pallas kernel: single invocation, whole block fused, batch folded into rows.
# ---------------------------------------------------------------------------
def encoder_block_kernel(x_ref, bias_ref, wqkv_ref, bqkv_ref, wo_ref,
                         w1_ref, b1_ref, w2_ref, vecs_ref, o_ref):
    x = x_ref[...]           # (N, D)
    bias = bias_ref[...]     # (H*N, N) additive mask bias, pre-tiled per head

    # packed small vectors: rows = [bo, gamma1, beta1, b2, gamma2, beta2]
    bo  = vecs_ref[0:1, :]
    g1  = vecs_ref[1:2, :]
    be1 = vecs_ref[2:3, :]
    b2  = vecs_ref[3:4, :]
    g2  = vecs_ref[4:5, :]
    be2 = vecs_ref[5:6, :]

    # ---- fused Q/K/V projection -----------------------------------------
    qkv = jnp.dot(x, wqkv_ref[...], preferred_element_type=jnp.float32)
    qkv = qkv + bqkv_ref[...]                               # (N, 3D)
    q = qkv[:, 0 * D:1 * D]
    k = qkv[:, 1 * D:2 * D]
    v = qkv[:, 2 * D:3 * D]

    scale = 1.0 / math.sqrt(DK)

    # ---- per-head scores, stacked along sublanes -> ONE fused softmax ----
    scores = [
        jnp.dot(q[:, h * DK:(h + 1) * DK], k[:, h * DK:(h + 1) * DK].T,
                preferred_element_type=jnp.float32) * scale
        for h in range(H)
    ]
    s_all = jnp.concatenate(scores, axis=0) + bias          # (H*N, N)
    s_all = s_all - jnp.max(s_all, axis=-1, keepdims=True)
    p_all = jnp.exp(s_all)
    denom = jnp.sum(p_all, axis=-1, keepdims=True)
    p_all = p_all * pl.reciprocal(denom, approx=False)      # one recip per row

    # ---- per-head context folded directly into the output projection -----
    attn = jnp.zeros((N, D), jnp.float32)
    for h in range(H):
        ph = p_all[h * N:(h + 1) * N, :]                     # (N, N)
        ctx = jnp.dot(ph, v[:, h * DK:(h + 1) * DK],
                      preferred_element_type=jnp.float32)    # (N, DK)
        attn = attn + jnp.dot(ctx, wo_ref[h * DK:(h + 1) * DK, :],
                              preferred_element_type=jnp.float32)
    attn = attn + bo

    # ---- Add & Norm 1 (post-norm: LayerNorm(x + sublayer(x))) ------------
    h1 = _layernorm(x + attn, g1, be1)

    # ---- feed-forward: Linear -> ReLU -> Linear ---------------------------
    f = jnp.dot(h1, w1_ref[...], preferred_element_type=jnp.float32) + b1_ref[...]
    f = jnp.maximum(f, 0.0)
    f = jnp.dot(f, w2_ref[...], preferred_element_type=jnp.float32) + b2

    # ---- Add & Norm 2 ------------------------------------------------------
    o_ref[...] = _layernorm(h1 + f, g2, be2).astype(o_ref.dtype)


def encoder_block(x, mask, params):
    """x: (B,S,D) f32, mask: (B,S,S) f32 (1=attend, 0=masked) -> (B,S,D) f32."""
    (wq, bq, wk, bk, wv, bv, wo, bo, g1, be1, w1, b1, w2, b2, g2, be2) = params

    # ---- pack parameters: 18 tiny inputs -> 9 ------------------------------
    wqkv = jnp.concatenate([wq, wk, wv], axis=1)                  # (D, 3D)
    bqkv = jnp.concatenate([bq, bk, bv], axis=1)                  # (1, 3D)
    vecs = jnp.concatenate([bo, g1, be1, b2, g2, be2], axis=0)    # (6, D)

    # ---- fold batch into rows ----------------------------------------------
    xf = x.reshape(N, D)

    # ---- precompute additive mask bias (block-diagonal over batches) -------
    within = jnp.where(mask == 0.0, NEG_INF, 0.0)                       # (B,S,S)
    same_b = jnp.arange(B)[:, None] == jnp.arange(B)[None, :]           # (B,B)
    bias = jnp.where(same_b[:, None, :, None], within[:, :, None, :], NEG_INF)
    bias = bias.reshape(N, N).astype(jnp.float32)
    bias = jnp.tile(bias, (H, 1))                                       # (H*N, N)

    vmem = pl.BlockSpec(memory_space=pltpu.MemorySpace.VMEM)
    out = pl.pallas_call(
        encoder_block_kernel,
        out_shape=jax.ShapeDtypeStruct((N, D), jnp.float32),
        in_specs=[vmem] * 9,
        out_specs=vmem,
    )(xf, bias, wqkv, bqkv, wo, w1, b1, w2, vecs)
    return out.reshape(B, S, D)


# ---------------------------------------------------------------------------
# pure-JAX reference (same math) for a correctness check
# ---------------------------------------------------------------------------
def encoder_block_ref(x, mask, params):
    (wq, bq, wk, bk, wv, bv, wo, bo, g1, be1, w1, b1, w2, b2, g2, be2) = params
    q = x @ wq + bq
    k = x @ wk + bk
    v = x @ wv + bv
    q = q.reshape(B, S, H, DK).transpose(0, 2, 1, 3)
    k = k.reshape(B, S, H, DK).transpose(0, 2, 1, 3)
    v = v.reshape(B, S, H, DK).transpose(0, 2, 1, 3)
    s = jnp.einsum("bhqd,bhkd->bhqk", q, k) / math.sqrt(DK)
    s = jnp.where(mask[:, None, :, :] == 0.0, NEG_INF, s)
    p = jax.nn.softmax(s, axis=-1)
    attn = jnp.einsum("bhqk,bhkd->bhqd", p, v).transpose(0, 2, 1, 3).reshape(B, S, D)
    attn = attn @ wo + bo
    h1 = _layernorm(x + attn, g1, be1)
    f = jnp.maximum(h1 @ w1 + b1, 0.0) @ w2 + b2
    return _layernorm(h1 + f, g2, be2)


# ---------------------------------------------------------------------------
# deterministic parameter init (synthetic weights, not a checkpoint)
# ---------------------------------------------------------------------------
def init_params(key):
    ks = jax.random.split(key, 8)
    scale = 0.05
    wq = jax.random.normal(ks[0], (D, D), jnp.float32) * scale
    wk = jax.random.normal(ks[1], (D, D), jnp.float32) * scale
    wv = jax.random.normal(ks[2], (D, D), jnp.float32) * scale
    wo = jax.random.normal(ks[3], (D, D), jnp.float32) * scale
    bq = jax.random.normal(ks[4], (1, D), jnp.float32) * scale
    bk = jnp.zeros((1, D), jnp.float32)
    bv = jnp.zeros((1, D), jnp.float32)
    bo = jnp.zeros((1, D), jnp.float32)
    g1 = jnp.ones((1, D), jnp.float32)
    be1 = jnp.zeros((1, D), jnp.float32)
    w1 = jax.random.normal(ks[5], (D, DFF), jnp.float32) * scale
    b1 = jax.random.normal(ks[6], (1, DFF), jnp.float32) * scale
    w2 = jax.random.normal(ks[7], (DFF, D), jnp.float32) * scale
    b2 = jnp.zeros((1, D), jnp.float32)
    g2 = jnp.ones((1, D), jnp.float32)
    be2 = jnp.zeros((1, D), jnp.float32)
    return (wq, bq, wk, bk, wv, bv, wo, bo, g1, be1, w1, b1, w2, b2, g2, be2)


if __name__ == "__main__":
    key = jax.random.PRNGKey(0)
    kx, kp = jax.random.split(key)
    x = jax.random.normal(kx, (B, S, D), jnp.float32)

    # padding mask: batch 0 attends to all 8 positions, batch 1 to first 5
    lens = jnp.array([8, 5])
    key_valid = jnp.arange(S)[None, :] < lens[:, None]          # (B, S)
    mask = jnp.broadcast_to(key_valid[:, None, :], (B, S, S)).astype(jnp.float32)

    params = init_params(kp)

    out = encoder_block(x, mask, params)
    out = jax.block_until_ready(out)

    ref = encoder_block_ref(x, mask, params)
    np.testing.assert_allclose(np.asarray(out), np.asarray(ref), rtol=1e-4, atol=1e-4)

    print("KERNEL_OK")
</pallas_src>

<mosaic_0001>
module attributes {stable_mosaic.version = 11 : i64} {
  func.func @encoder_block_kernel(%arg0: memref<16x32xf32, #tpu.memory_space<vmem>>, %arg1: memref<64x16xf32, #tpu.memory_space<vmem>>, %arg2: memref<32x96xf32, #tpu.memory_space<vmem>>, %arg3: memref<1x96xf32, #tpu.memory_space<vmem>>, %arg4: memref<32x32xf32, #tpu.memory_space<vmem>>, %arg5: memref<32x64xf32, #tpu.memory_space<vmem>>, %arg6: memref<1x64xf32, #tpu.memory_space<vmem>>, %arg7: memref<64x32xf32, #tpu.memory_space<vmem>>, %arg8: memref<6x32xf32, #tpu.memory_space<vmem>>, %arg9: memref<16x32xf32, #tpu.memory_space<vmem>>) attributes {dimension_semantics = [], scalar_prefetch = 0 : i64, scratch_operands = 0 : i64, tpu.core_type = #tpu.core_type<tc>} {
    %c0 = arith.constant 0 : index
    %c0_0 = arith.constant 0 : index
    %0 = vector.load %arg0[%c0, %c0_0] : memref<16x32xf32, #tpu.memory_space<vmem>>, vector<16x32xf32>
    %c0_1 = arith.constant 0 : index
    %c0_2 = arith.constant 0 : index
    %1 = vector.load %arg1[%c0_1, %c0_2] : memref<64x16xf32, #tpu.memory_space<vmem>>, vector<64x16xf32>
    %c0_3 = arith.constant 0 : index
    %c0_4 = arith.constant 0 : index
    %2 = vector.load %arg8[%c0_3, %c0_4] : memref<6x32xf32, #tpu.memory_space<vmem>>, vector<1x32xf32>
    %c1 = arith.constant 1 : index
    %c0_5 = arith.constant 0 : index
    %3 = vector.load %arg8[%c1, %c0_5] : memref<6x32xf32, #tpu.memory_space<vmem>>, vector<1x32xf32>
    %c2 = arith.constant 2 : index
    %c0_6 = arith.constant 0 : index
    %4 = vector.load %arg8[%c2, %c0_6] : memref<6x32xf32, #tpu.memory_space<vmem>>, vector<1x32xf32>
    %c3 = arith.constant 3 : index
    %c0_7 = arith.constant 0 : index
    %5 = vector.load %arg8[%c3, %c0_7] : memref<6x32xf32, #tpu.memory_space<vmem>>, vector<1x32xf32>
    %c4 = arith.constant 4 : index
    %c0_8 = arith.constant 0 : index
    %6 = vector.load %arg8[%c4, %c0_8] : memref<6x32xf32, #tpu.memory_space<vmem>>, vector<1x32xf32>
    %c5 = arith.constant 5 : index
    %c0_9 = arith.constant 0 : index
    %7 = vector.load %arg8[%c5, %c0_9] : memref<6x32xf32, #tpu.memory_space<vmem>>, vector<1x32xf32>
    %c0_10 = arith.constant 0 : index
    %c0_11 = arith.constant 0 : index
    %8 = vector.load %arg2[%c0_10, %c0_11] : memref<32x96xf32, #tpu.memory_space<vmem>>, vector<32x96xf32>
    %cst = arith.constant dense<0.000000e+00> : vector<16x96xf32>
    %9 = tpu.matmul %0, %8, %cst {dimension_numbers = #tpu.dot_dimension_numbers<[1], [0], [0], [1], [0, 0, 1, 1], [], []>} : vector<16x32xf32>, vector<32x96xf32>, vector<16x96xf32> -> vector<16x96xf32>
    %c0_12 = arith.constant 0 : index
    %c0_13 = arith.constant 0 : index
    %10 = vector.load %arg3[%c0_12, %c0_13] : memref<1x96xf32, #tpu.memory_space<vmem>>, vector<1x96xf32>
    %11 = vector.broadcast %10 : vector<1x96xf32> to vector<16x96xf32>
    %12 = arith.addf %9, %11 : vector<16x96xf32>
    %13 = vector.extract_strided_slice %12 {offsets = [0, 0], sizes = [16, 32], strides = [1, 1]} : vector<16x96xf32> to vector<16x32xf32>
    %14 = vector.extract_strided_slice %12 {offsets = [0, 32], sizes = [16, 32], strides = [1, 1]} : vector<16x96xf32> to vector<16x32xf32>
    %15 = vector.extract_strided_slice %12 {offsets = [0, 64], sizes = [16, 32], strides = [1, 1]} : vector<16x96xf32> to vector<16x32xf32>
    %16 = vector.extract_strided_slice %13 {offsets = [0, 0], sizes = [16, 8], strides = [1, 1]} : vector<16x32xf32> to vector<16x8xf32>
    %17 = vector.extract_strided_slice %14 {offsets = [0, 0], sizes = [16, 8], strides = [1, 1]} : vector<16x32xf32> to vector<16x8xf32>
    %18 = tpu.transpose %17, [1, 0] : vector<16x8xf32> -> vector<8x16xf32>
    %cst_14 = arith.constant dense<0.000000e+00> : vector<16x16xf32>
    %19 = tpu.matmul %16, %18, %cst_14 {dimension_numbers = #tpu.dot_dimension_numbers<[1], [0], [0], [1], [0, 0, 1, 1], [], []>} : vector<16x8xf32>, vector<8x16xf32>, vector<16x16xf32> -> vector<16x16xf32>
    %cst_15 = arith.constant 0.353553385 : f32
    %20 = vector.broadcast %cst_15 : f32 to vector<16x16xf32>
    %21 = arith.mulf %19, %20 : vector<16x16xf32>
    %22 = vector.extract_strided_slice %13 {offsets = [0, 8], sizes = [16, 8], strides = [1, 1]} : vector<16x32xf32> to vector<16x8xf32>
    %23 = vector.extract_strided_slice %14 {offsets = [0, 8], sizes = [16, 8], strides = [1, 1]} : vector<16x32xf32> to vector<16x8xf32>
    %24 = tpu.transpose %23, [1, 0] : vector<16x8xf32> -> vector<8x16xf32>
    %cst_16 = arith.constant dense<0.000000e+00> : vector<16x16xf32>
    %25 = tpu.matmul %22, %24, %cst_16 {dimension_numbers = #tpu.dot_dimension_numbers<[1], [0], [0], [1], [0, 0, 1, 1], [], []>} : vector<16x8xf32>, vector<8x16xf32>, vector<16x16xf32> -> vector<16x16xf32>
    %cst_17 = arith.constant 0.353553385 : f32
    %26 = vector.broadcast %cst_17 : f32 to vector<16x16xf32>
    %27 = arith.mulf %25, %26 : vector<16x16xf32>
    %28 = vector.extract_strided_slice %13 {offsets = [0, 16], sizes = [16, 8], strides = [1, 1]} : vector<16x32xf32> to vector<16x8xf32>
    %29 = vector.extract_strided_slice %14 {offsets = [0, 16], sizes = [16, 8], strides = [1, 1]} : vector<16x32xf32> to vector<16x8xf32>
    %30 = tpu.transpose %29, [1, 0] : vector<16x8xf32> -> vector<8x16xf32>
    %cst_18 = arith.constant dense<0.000000e+00> : vector<16x16xf32>
    %31 = tpu.matmul %28, %30, %cst_18 {dimension_numbers = #tpu.dot_dimension_numbers<[1], [0], [0], [1], [0, 0, 1, 1], [], []>} : vector<16x8xf32>, vector<8x16xf32>, vector<16x16xf32> -> vector<16x16xf32>
    %cst_19 = arith.constant 0.353553385 : f32
    %32 = vector.broadcast %cst_19 : f32 to vector<16x16xf32>
    %33 = arith.mulf %31, %32 : vector<16x16xf32>
    %34 = vector.extract_strided_slice %13 {offsets = [0, 24], sizes = [16, 8], strides = [1, 1]} : vector<16x32xf32> to vector<16x8xf32>
    %35 = vector.extract_strided_slice %14 {offsets = [0, 24], sizes = [16, 8], strides = [1, 1]} : vector<16x32xf32> to vector<16x8xf32>
    %36 = tpu.transpose %35, [1, 0] : vector<16x8xf32> -> vector<8x16xf32>
    %cst_20 = arith.constant dense<0.000000e+00> : vector<16x16xf32>
    %37 = tpu.matmul %34, %36, %cst_20 {dimension_numbers = #tpu.dot_dimension_numbers<[1], [0], [0], [1], [0, 0, 1, 1], [], []>} : vector<16x8xf32>, vector<8x16xf32>, vector<16x16xf32> -> vector<16x16xf32>
    %cst_21 = arith.constant 0.353553385 : f32
    %38 = vector.broadcast %cst_21 : f32 to vector<16x16xf32>
    %39 = arith.mulf %37, %38 : vector<16x16xf32>
    %40 = tpu.concatenate %21, %27, %33, %39 in 0 : vector<16x16xf32>, vector<16x16xf32>, vector<16x16xf32>, vector<16x16xf32> -> vector<64x16xf32>
    %41 = arith.addf %40, %1 : vector<64x16xf32>
    %cst_22 = arith.constant dense<0xFF800000> : vector<64xf32>
    %42 = vector.multi_reduction <maximumf>, %41, %cst_22 [1] : vector<64x16xf32> to vector<64xf32>
    %43 = vector.shape_cast %42 : vector<64xf32> to vector<64x1xf32>
    %44 = vector.broadcast %43 : vector<64x1xf32> to vector<64x16xf32>
    %45 = arith.subf %41, %44 : vector<64x16xf32>
    %46 = math.exp %45 : vector<64x16xf32>
    %cst_23 = arith.constant dense<0.000000e+00> : vector<64xf32>
    %47 = vector.multi_reduction <add>, %46, %cst_23 [1] : vector<64x16xf32> to vector<64xf32>
    %48 = vector.shape_cast %47 : vector<64xf32> to vector<64x1xf32>
    %49 = tpu.reciprocal %48 : vector<64x1xf32> -> vector<64x1xf32>
    %50 = vector.broadcast %49 : vector<64x1xf32> to vector<64x16xf32>
    %51 = arith.mulf %46, %50 : vector<64x16xf32>
    %cst_24 = arith.constant 0.000000e+00 : f32
    %52 = vector.broadcast %cst_24 : f32 to vector<16x32xf32>
    %53 = vector.extract_strided_slice %51 {offsets = [0, 0], sizes = [16, 16], strides = [1, 1]} : vector<64x16xf32> to vector<16x16xf32>
    %54 = vector.extract_strided_slice %15 {offsets = [0, 0], sizes = [16, 8], strides = [1, 1]} : vector<16x32xf32> to vector<16x8xf32>
    %cst_25 = arith.constant dense<0.000000e+00> : vector<16x8xf32>
    %55 = tpu.matmul %53, %54, %cst_25 {dimension_numbers = #tpu.dot_dimension_numbers<[1], [0], [0], [1], [0, 0, 1, 1], [], []>} : vector<16x16xf32>, vector<16x8xf32>, vector<16x8xf32> -> vector<16x8xf32>
    %c0_26 = arith.constant 0 : index
    %c0_27 = arith.constant 0 : index
    %56 = vector.load %arg4[%c0_26, %c0_27] : memref<32x32xf32, #tpu.memory_space<vmem>>, vector<8x32xf32>
    %cst_28 = arith.constant dense<0.000000e+00> : vector<16x32xf32>
    %57 = tpu.matmul %55, %56, %cst_28 {dimension_numbers = #tpu.dot_dimension_numbers<[1], [0], [0], [1], [0, 0, 1, 1], [], []>} : vector<16x8xf32>, vector<8x32xf32>, vector<16x32xf32> -> vector<16x32xf32>
    %58 = arith.addf %52, %57 : vector<16x32xf32>
    %59 = vector.extract_strided_slice %51 {offsets = [16, 0], sizes = [16, 16], strides = [1, 1]} : vector<64x16xf32> to vector<16x16xf32>
    %60 = vector.extract_strided_slice %15 {offsets = [0, 8], sizes = [16, 8], strides = [1, 1]} : vector<16x32xf32> to vector<16x8xf32>
    %cst_29 = arith.constant dense<0.000000e+00> : vector<16x8xf32>
    %61 = tpu.matmul %59, %60, %cst_29 {dimension_numbers = #tpu.dot_dimension_numbers<[1], [0], [0], [1], [0, 0, 1, 1], [], []>} : vector<16x16xf32>, vector<16x8xf32>, vector<16x8xf32> -> vector<16x8xf32>
    %c8 = arith.constant 8 : index
    %c0_30 = arith.constant 0 : index
    %62 = vector.load %arg4[%c8, %c0_30] : memref<32x32xf32, #tpu.memory_space<vmem>>, vector<8x32xf32>
    %cst_31 = arith.constant dense<0.000000e+00> : vector<16x32xf32>
    %63 = tpu.matmul %61, %62, %cst_31 {dimension_numbers = #tpu.dot_dimension_numbers<[1], [0], [0], [1], [0, 0, 1, 1], [], []>} : vector<16x8xf32>, vector<8x32xf32>, vector<16x32xf32> -> vector<16x32xf32>
    %64 = arith.addf %58, %63 : vector<16x32xf32>
    %65 = vector.extract_strided_slice %51 {offsets = [32, 0], sizes = [16, 16], strides = [1, 1]} : vector<64x16xf32> to vector<16x16xf32>
    %66 = vector.extract_strided_slice %15 {offsets = [0, 16], sizes = [16, 8], strides = [1, 1]} : vector<16x32xf32> to vector<16x8xf32>
    %cst_32 = arith.constant dense<0.000000e+00> : vector<16x8xf32>
    %67 = tpu.matmul %65, %66, %cst_32 {dimension_numbers = #tpu.dot_dimension_numbers<[1], [0], [0], [1], [0, 0, 1, 1], [], []>} : vector<16x16xf32>, vector<16x8xf32>, vector<16x8xf32> -> vector<16x8xf32>
    %c16 = arith.constant 16 : index
    %c0_33 = arith.constant 0 : index
    %68 = vector.load %arg4[%c16, %c0_33] : memref<32x32xf32, #tpu.memory_space<vmem>>, vector<8x32xf32>
    %cst_34 = arith.constant dense<0.000000e+00> : vector<16x32xf32>
    %69 = tpu.matmul %67, %68, %cst_34 {dimension_numbers = #tpu.dot_dimension_numbers<[1], [0], [0], [1], [0, 0, 1, 1], [], []>} : vector<16x8xf32>, vector<8x32xf32>, vector<16x32xf32> -> vector<16x32xf32>
    %70 = arith.addf %64, %69 : vector<16x32xf32>
    %71 = vector.extract_strided_slice %51 {offsets = [48, 0], sizes = [16, 16], strides = [1, 1]} : vector<64x16xf32> to vector<16x16xf32>
    %72 = vector.extract_strided_slice %15 {offsets = [0, 24], sizes = [16, 8], strides = [1, 1]} : vector<16x32xf32> to vector<16x8xf32>
    %cst_35 = arith.constant dense<0.000000e+00> : vector<16x8xf32>
    %73 = tpu.matmul %71, %72, %cst_35 {dimension_numbers = #tpu.dot_dimension_numbers<[1], [0], [0], [1], [0, 0, 1, 1], [], []>} : vector<16x16xf32>, vector<16x8xf32>, vector<16x8xf32> -> vector<16x8xf32>
    %c24 = arith.constant 24 : index
    %c0_36 = arith.constant 0 : index
    %74 = vector.load %arg4[%c24, %c0_36] : memref<32x32xf32, #tpu.memory_space<vmem>>, vector<8x32xf32>
    %cst_37 = arith.constant dense<0.000000e+00> : vector<16x32xf32>
    %75 = tpu.matmul %73, %74, %cst_37 {dimension_numbers = #tpu.dot_dimension_numbers<[1], [0], [0], [1], [0, 0, 1, 1], [], []>} : vector<16x8xf32>, vector<8x32xf32>, vector<16x32xf32> -> vector<16x32xf32>
    %76 = arith.addf %70, %75 : vector<16x32xf32>
    %77 = vector.broadcast %2 : vector<1x32xf32> to vector<16x32xf32>
    %78 = arith.addf %76, %77 : vector<16x32xf32>
    %79 = arith.addf %0, %78 : vector<16x32xf32>
    %cst_38 = arith.constant dense<0.000000e+00> : vector<16xf32>
    %80 = vector.multi_reduction <add>, %79, %cst_38 [1] : vector<16x32xf32> to vector<16xf32>
    %81 = vector.shape_cast %80 : vector<16xf32> to vector<16x1xf32>
    %cst_39 = arith.constant 3.200000e+01 : f32
    %82 = vector.broadcast %cst_39 : f32 to vector<16x1xf32>
    %83 = arith.divf %81, %82 : vector<16x1xf32>
    %84 = vector.broadcast %83 : vector<16x1xf32> to vector<16x32xf32>
    %85 = arith.subf %79, %84 : vector<16x32xf32>
    %86 = arith.mulf %85, %85 : vector<16x32xf32>
    %cst_40 = arith.constant dense<0.000000e+00> : vector<16xf32>
    %87 = vector.multi_reduction <add>, %86, %cst_40 [1] : vector<16x32xf32> to vector<16xf32>
    %88 = vector.shape_cast %87 : vector<16xf32> to vector<16x1xf32>
    %cst_41 = arith.constant 3.200000e+01 : f32
    %89 = vector.broadcast %cst_41 : f32 to vector<16x1xf32>
    %90 = arith.divf %88, %89 : vector<16x1xf32>
    %91 = vector.broadcast %83 : vector<16x1xf32> to vector<16x32xf32>
    %92 = arith.subf %79, %91 : vector<16x32xf32>
    %93 = vector.broadcast %3 : vector<1x32xf32> to vector<16x32xf32>
    %94 = arith.mulf %93, %92 : vector<16x32xf32>
    %cst_42 = arith.constant 9.99999997E-7 : f32
    %95 = vector.broadcast %cst_42 : f32 to vector<16x1xf32>
    %96 = arith.addf %90, %95 : vector<16x1xf32>
    %97 = math.rsqrt %96 : vector<16x1xf32>
    %98 = vector.broadcast %97 : vector<16x1xf32> to vector<16x32xf32>
    %99 = arith.mulf %94, %98 : vector<16x32xf32>
    %100 = vector.broadcast %4 : vector<1x32xf32> to vector<16x32xf32>
    %101 = arith.addf %99, %100 : vector<16x32xf32>
    %c0_43 = arith.constant 0 : index
    %c0_44 = arith.constant 0 : index
    %102 = vector.load %arg5[%c0_43, %c0_44] : memref<32x64xf32, #tpu.memory_space<vmem>>, vector<32x64xf32>
    %cst_45 = arith.constant dense<0.000000e+00> : vector<16x64xf32>
    %103 = tpu.matmul %101, %102, %cst_45 {dimension_numbers = #tpu.dot_dimension_numbers<[1], [0], [0], [1], [0, 0, 1, 1], [], []>} : vector<16x32xf32>, vector<32x64xf32>, vector<16x64xf32> -> vector<16x64xf32>
    %c0_46 = arith.constant 0 : index
    %c0_47 = arith.constant 0 : index
    %104 = vector.load %arg6[%c0_46, %c0_47] : memref<1x64xf32, #tpu.memory_space<vmem>>, vector<1x64xf32>
    %105 = vector.broadcast %104 : vector<1x64xf32> to vector<16x64xf32>
    %106 = arith.addf %103, %105 : vector<16x64xf32>
    %cst_48 = arith.constant 0.000000e+00 : f32
    %107 = vector.broadcast %cst_48 : f32 to vector<16x64xf32>
    %108 = arith.maximumf %106, %107 : vector<16x64xf32>
    %c0_49 = arith.constant 0 : index
    %c0_50 = arith.constant 0 : index
    %109 = vector.load %arg7[%c0_49, %c0_50] : memref<64x32xf32, #tpu.memory_space<vmem>>, vector<64x32xf32>
    %cst_51 = arith.constant dense<0.000000e+00> : vector<16x32xf32>
    %110 = tpu.matmul %108, %109, %cst_51 {dimension_numbers = #tpu.dot_dimension_numbers<[1], [0], [0], [1], [0, 0, 1, 1], [], []>} : vector<16x64xf32>, vector<64x32xf32>, vector<16x32xf32> -> vector<16x32xf32>
    %111 = vector.broadcast %5 : vector<1x32xf32> to vector<16x32xf32>
    %112 = arith.addf %110, %111 : vector<16x32xf32>
    %113 = arith.addf %101, %112 : vector<16x32xf32>
    %cst_52 = arith.constant dense<0.000000e+00> : vector<16xf32>
    %114 = vector.multi_reduction <add>, %113, %cst_52 [1] : vector<16x32xf32> to vector<16xf32>
    %115 = vector.shape_cast %114 : vector<16xf32> to vector<16x1xf32>
    %cst_53 = arith.constant 3.200000e+01 : f32
    %116 = vector.broadcast %cst_53 : f32 to vector<16x1xf32>
    %117 = arith.divf %115, %116 : vector<16x1xf32>
    %118 = vector.broadcast %117 : vector<16x1xf32> to vector<16x32xf32>
    %119 = arith.subf %113, %118 : vector<16x32xf32>
    %120 = arith.mulf %119, %119 : vector<16x32xf32>
    %cst_54 = arith.constant dense<0.000000e+00> : vector<16xf32>
    %121 = vector.multi_reduction <add>, %120, %cst_54 [1] : vector<16x32xf32> to vector<16xf32>
    %122 = vector.shape_cast %121 : vector<16xf32> to vector<16x1xf32>
    %cst_55 = arith.constant 3.200000e+01 : f32
    %123 = vector.broadcast %cst_55 : f32 to vector<16x1xf32>
    %124 = arith.divf %122, %123 : vector<16x1xf32>
    %125 = vector.broadcast %117 : vector<16x1xf32> to vector<16x32xf32>
    %126 = arith.subf %113, %125 : vector<16x32xf32>
    %127 = vector.broadcast %6 : vector<1x32xf32> to vector<16x32xf32>
    %128 = arith.mulf %127, %126 : vector<16x32xf32>
    %cst_56 = arith.constant 9.99999997E-7 : f32
    %129 = vector.broadcast %cst_56 : f32 to vector<16x1xf32>
    %130 = arith.addf %124, %129 : vector<16x1xf32>
    %131 = math.rsqrt %130 : vector<16x1xf32>
    %132 = vector.broadcast %131 : vector<16x1xf32> to vector<16x32xf32>
    %133 = arith.mulf %128, %132 : vector<16x32xf32>
    %134 = vector.broadcast %7 : vector<1x32xf32> to vector<16x32xf32>
    %135 = arith.addf %133, %134 : vector<16x32xf32>
    %c0_57 = arith.constant 0 : index
    %c0_58 = arith.constant 0 : index
    %136 = vector.load %arg9[%c0_57, %c0_58] : memref<16x32xf32, #tpu.memory_space<vmem>>, vector<16x32xf32>
    tpu.vector_store %arg9[%c0_57, %c0_58], %135 {strides = array<i32>} : memref<16x32xf32, #tpu.memory_space<vmem>>, vector<16x32xf32>,
    return
  }
}

</mosaic_0001>

<llo_original>
// kernel: tpu_custom_call.1
$region0: #{tpu_custom_call.1}
  #allocation0 [shape = 'u32[]', space=smem, size = 0x4, offset = 0x4, fixed_abs, tag = 'smem constant byte address 0x4 - core index']
  #allocation1 [shape = 'u32[144,128]{1,0:T(1,128)}', space=vmem, size = 0x12000, scoped, tag = 'internal scratch']
  %s0 = inlined_call_operand.vmem [shape: f32[16,32], index: 0, kind: input, shape index: {}]
  %s1 = inlined_call_operand.vmem [shape: f32[64,16], index: 1, kind: input, shape index: {}]
  %s2 = inlined_call_operand.vmem [shape: f32[32,96], index: 2, kind: input, shape index: {}]
  %s3 = inlined_call_operand.vmem [shape: f32[1,96], index: 3, kind: input, shape index: {}]
  %s4 = inlined_call_operand.vmem [shape: f32[32,32], index: 4, kind: input, shape index: {}]
  %s5 = inlined_call_operand.vmem [shape: f32[32,64], index: 5, kind: input, shape index: {}]
  %s6 = inlined_call_operand.vmem [shape: f32[1,64], index: 6, kind: input, shape index: {}]
  %s7 = inlined_call_operand.vmem [shape: f32[64,32], index: 7, kind: input, shape index: {}]
  %s8 = inlined_call_operand.vmem [shape: f32[6,32], index: 8, kind: input, shape index: {}]
  %s9 = inlined_call_operand.hbm [shape: f32[16,32], index: 9, kind: output, shape index: {}]
  %s10 = sld [smem:[#allocation0]]
  $region46: #{tpu_custom_call.1} parent=0
    _
  %s12 = ssub.s32 1, %s10
  %s13 = scalar_select 0, %s12, %s10
  $region1: #{tpu_custom_call.1} parent=0
    #allocation2 [shape = 'u8[8192]{0}', space=vmem, size = 0x2000, scoped, tag = 'output window, operand 0, single buffered']
    #allocation3 [shape = 's32[1]{0}', space=sflag, size = 0x4, scoped, tag = 'scoped memory for tpu_custom_call.1']
    %14 = vsyncpa [#allocation3], 0
    // Predicated region
    $region2: #{tpu_custom_call.1} parent=1 // pred_check
      _
    $region3: #{tpu_custom_call.1} parent=1 // pred_check_branch
      %16 = sbr.rel (0) target = $region5
    $region4: #{tpu_custom_call.1} parent=1 // pred_region
      _
    $region5: #{tpu_custom_call.1} parent=1 // pred_fallthru
      _
    // Predicated region
    $region6: #{tpu_custom_call.1} parent=1 // pred_check
      _
    $region7: #{tpu_custom_call.1} parent=1 // pred_check_branch
      %18 = sbr.rel (0) target = $region9
    $region8: #{tpu_custom_call.1} parent=1 // pred_region
      _
    $region9: #{tpu_custom_call.1} parent=1 // pred_fallthru
      _
    // Predicated region
    $region10: #{tpu_custom_call.1} parent=1 // pred_check
      _
    $region11: #{tpu_custom_call.1} parent=1 // pred_check_branch
      %20 = sbr.rel (0) target = $region13
    $region12: #{tpu_custom_call.1} parent=1 // pred_region
      _
    $region13: #{tpu_custom_call.1} parent=1 // pred_fallthru
      _
    // Predicated region
    $region14: #{tpu_custom_call.1} parent=1 // pred_check
      _
    $region15: #{tpu_custom_call.1} parent=1 // pred_check_branch
      %22 = sbr.rel (0) target = $region17
    $region16: #{tpu_custom_call.1} parent=1 // pred_region
      _
    $region17: #{tpu_custom_call.1} parent=1 // pred_fallthru
      _
    // Predicated region
    $region18: #{tpu_custom_call.1} parent=1 // pred_check
      _
    $region19: #{tpu_custom_call.1} parent=1 // pred_check_branch
      %24 = sbr.rel (0) target = $region21
    $region20: #{tpu_custom_call.1} parent=1 // pred_region
      _
    $region21: #{tpu_custom_call.1} parent=1 // pred_fallthru
      _
    // Predicated region
    $region22: #{tpu_custom_call.1} parent=1 // pred_check
      _
    $region23: #{tpu_custom_call.1} parent=1 // pred_check_branch
      %26 = sbr.rel (0) target = $region25
    $region24: #{tpu_custom_call.1} parent=1 // pred_region
      _
    $region25: #{tpu_custom_call.1} parent=1 // pred_fallthru
      _
    // Predicated region
    $region26: #{tpu_custom_call.1} parent=1 // pred_check
      _
    $region27: #{tpu_custom_call.1} parent=1 // pred_check_branch
      %28 = sbr.rel (0) target = $region29
    $region28: #{tpu_custom_call.1} parent=1 // pred_region
      _
    $region29: #{tpu_custom_call.1} parent=1 // pred_fallthru
      _
    // Predicated region
    $region30: #{tpu_custom_call.1} parent=1 // pred_check
      _
    $region31: #{tpu_custom_call.1} parent=1 // pred_check_branch
      %30 = sbr.rel (0) target = $region33
    $region32: #{tpu_custom_call.1} parent=1 // pred_region
      _
    $region33: #{tpu_custom_call.1} parent=1 // pred_fallthru
      _
    // Predicated region
    $region34: #{tpu_custom_call.1} parent=1 // pred_check
      _
    $region35: #{tpu_custom_call.1} parent=1 // pred_check_branch
      %32 = sbr.rel (0) target = $region37
    $region36: #{tpu_custom_call.1} parent=1 // pred_region
      _
    $region37: #{tpu_custom_call.1} parent=1 // pred_fallthru
      _
    %v33 = vld [vmem:[%s0] sm:$0xff]
    %v34 = vld [vmem:[%s0 + $0x8] sm:$0xff]
    %v35 = vld [vmem:[%s1] sm:$0xff]
    %v36 = vld [vmem:[%s1 + $0x8] sm:$0xff]
    %v37 = vld [vmem:[%s1 + $0x10] sm:$0xff]
    %v38 = vld [vmem:[%s1 + $0x18] sm:$0xff]
    %v39 = vld [vmem:[%s1 + $0x20] sm:$0xff]
    %v40 = vld [vmem:[%s1 + $0x28] sm:$0xff]
    %v41 = vld [vmem:[%s1 + $0x30] sm:$0xff]
    %v42 = vld [vmem:[%s1 + $0x38] sm:$0xff]
    %v43 = vld [vmem:[%s8] sm:$0x1]
    %v44 = vld [vmem:[%s8 + $0x1] sm:$0x1]
    %v45 = vld [vmem:[%s8 + $0x2] sm:$0x1]
    %v46 = vld [vmem:[%s8 + $0x3] sm:$0x1]
    %v47 = vld [vmem:[%s8 + $0x4] sm:$0x1]
    %v48 = vld [vmem:[%s8 + $0x5] sm:$0x1]
    %v49 = vld [vmem:[%s2] sm:$0xff]
    %v50 = vld [vmem:[%s2 + $0x8] sm:$0xff]
    %v51 = vld [vmem:[%s2 + $0x10] sm:$0xff]
    %v52 = vld [vmem:[%s2 + $0x18] sm:$0xff]
    %v53 = vld [vmem:[%s3] sm:$0x1]
    %v55 = vlaneseq
    %v56 = vshrl.u32 %v55, 7
    %v57 = vsub.s32 0, %v56
    %v58 = vrot.slane %v53, %v57
    %vm60 = vcmask 261120
    %v62 = vsel %vm60, %v33, 0
    %v65 = vsel %vm60, %v34, 0
    %67 = vmatprep.subr.mxu0 0.0
    %68 = vmatpush1.msra.mxu0 %v49
    %69 = vmatprep.subr.mxu0 0.0
    %70 = vmatpush1.msra.mxu0 %v50
    %71 = vmatprep.subr.mxu0 0.0
    %72 = vmatpush1.msra.mxu0 %v51
    %73 = vmatprep.subr.mxu0 0.0
    %74 = vmatpush1.msra.mxu0 %v52
    %75 = vmatprep.subr.mxu0 0.0
    %76 = vmatpush1.msra.mxu0 0.0
    %77 = vmatprep.subr.mxu0 0.0
    %78 = vmatpush1.msra.mxu0 0.0
    %79 = vmatprep.subr.mxu0 0.0
    %80 = vmatpush1.msra.mxu0 0.0
    %81 = vmatprep.subr.mxu0 0.0
    %82 = vmatpush1.msra.mxu0 0.0
    %83 = vmatprep.subr.mxu0 0.0
    %84 = vmatpush1.msra.mxu0 0.0
    %85 = vmatprep.subr.mxu0 0.0
    %86 = vmatpush1.msra.mxu0 0.0
    %87 = vmatprep.subr.mxu0 0.0
    %88 = vmatpush1.msra.mxu0 0.0
    %89 = vmatprep.subr.mxu0 0.0
    %90 = vmatpush1.msra.mxu0 0.0
    %91 = vmatprep.subr.mxu0 0.0
    %92 = vmatpush1.msra.mxu0 0.0
    %93 = vmatprep.subr.mxu0 0.0
    %94 = vmatpush1.msra.mxu0 0.0
    %95 = vmatprep.subr.mxu0 0.0
    %96 = vmatpush1.msra.mxu0 0.0
    %97 = vmatprep.subr.mxu0 0.0
    %98 = vmatpush1.msra.mxu0 0.0
    %99 = vmatprep.subr.mxu0 0.0
    %100 = vmatpush1.msra.mxu0 0.0
    %101 = vmatprep.subr.mxu0 0.0
    %102 = vmatpush1.msra.mxu0 0.0
    %103 = vmatprep.subr.mxu0 0.0
    %104 = vmatpush1.msra.mxu0 0.0
    %105 = vmatprep.subr.mxu0 0.0
    %106 = vmatpush1.msra.mxu0 0.0
    %107 = vmatprep.subr.mxu0 0.0
    %108 = vmatpush1.msra.mxu0 0.0
    %109 = vmatprep.subr.mxu0 0.0
    %110 = vmatpush1.msra.mxu0 0.0
    %111 = vmatprep.subr.mxu0 0.0
    %112 = vmatpush1.msra.mxu0 0.0
    %113 = vmatprep.subr.mxu0 0.0
    %114 = vmatpush1.msra.mxu0 0.0
    %115 = vmatprep.subr.mxu0 0.0
    %116 = vmatpush1.msra.mxu0 0.0
    %117 = vmatprep.subr.mxu0 0.0
    %118 = vmatpush1.msra.mxu0 0.0
    %119 = vmatprep.subr.mxu0 0.0
    %120 = vmatpush1.msra.mxu0 0.0
    %121 = vmatprep.subr.mxu0 0.0
    %122 = vmatpush1.msra.mxu0 0.0
    %123 = vmatprep.subr.mxu0 0.0
    %124 = vmatpush1.msra.mxu0 0.0
    %125 = vmatprep.subr.mxu0 0.0
    %126 = vmatpush1.msra.mxu0 0.0
    %127 = vmatprep.subr.mxu0 0.0
    %128 = vmatpush1.msra.mxu0 0.0
    %129 = vmatprep.subr.mxu0 0.0
    %130 = vmatpush1.msra.mxu0 0.0
    %131 = vmatprep.mubr.f32.mxu0 0.0
    %132 = vmatmul.mubr.f32.gmra.mrb[0].mxu0 %v62
    %v133 = vpop.f32.mrb[0].mxu0
    %v134 = vadd.f32 %v58, %v133
    %v135 = vpop.f32.mrb[0].mxu0
    %136 = vmatprep.mubr.f32.mxu0 0.0
    %137 = vmatmul.mubr.f32.gmra.mrb[0].mxu0 %v65
    %v138 = vpop.f32.mrb[0].mxu0
    %v139 = vadd.f32 %v58, %v138
    %v140 = vpop.f32.mrb[0].mxu0
    %141 = vdwg.mxu0
    %144 = vrot.lane.b32.xlu0 %v134, 96
    %v145 = vpop.permute.xlu0 %144
    %146 = vrot.lane.b32.xlu0 %v139, 96
    %v147 = vpop.permute.xlu0 %146
    %vm148 = vcmask 64512
    %v149 = vsel %vm148, %v134, 0
    %v151 = vsel %vm148, %v139, 0
    %v153 = vsel %vm148, %v145, 0
    %v155 = vsel %vm148, %v147, 0
    %157 = vmatprep.subr.mxu0 0.0
    %158 = vmatpush1.xpose.msra.mxu0 %v153
    %159 = vmatprep.subr.mxu0 0.0
    %160 = vmatpush1.xpose.msra.mxu0 %v155
    %161 = vmatprep.subr.mxu0 0.0
    %162 = vmatpush1.xpose.msra.mxu0 0.0
    %163 = vmatprep.subr.mxu0 0.0
    %164 = vmatpush1.xpose.msra.mxu0 0.0
    %165 = vmatprep.subr.mxu0 0.0
    %166 = vmatpush1.xpose.msra.mxu0 0.0
    %167 = vmatprep.subr.mxu0 0.0
    %168 = vmatpush1.xpose.msra.mxu0 0.0
    %169 = vmatprep.subr.mxu0 0.0
    %170 = vmatpush1.xpose.msra.mxu0 0.0
    %171 = vmatprep.subr.mxu0 0.0
    %172 = vmatpush1.xpose.msra.mxu0 0.0
    %173 = vmatprep.subr.mxu0 0.0
    %174 = vmatpush1.xpose.msra.mxu0 0.0
    %175 = vmatprep.subr.mxu0 0.0
    %176 = vmatpush1.xpose.msra.mxu0 0.0
    %177 = vmatprep.subr.mxu0 0.0
    %178 = vmatpush1.xpose.msra.mxu0 0.0
    %179 = vmatprep.subr.mxu0 0.0
    %180 = vmatpush1.xpose.msra.mxu0 0.0
    %181 = vmatprep.subr.mxu0 0.0
    %182 = vmatpush1.xpose.msra.mxu0 0.0
    %183 = vmatprep.subr.mxu0 0.0
    %184 = vmatpush1.xpose.msra.mxu0 0.0
    %185 = vmatprep.subr.mxu0 0.0
    %186 = vmatpush1.xpose.msra.mxu0 0.0
    %187 = vmatprep.subr.mxu0 0.0
    %188 = vmatpush1.xpose.msra.mxu0 0.0
    %189 = vmatprep.subr.mxu0 0.0
    %190 = vmatpush1.xpose.msra.mxu0 0.0
    %191 = vmatprep.subr.mxu0 0.0
    %192 = vmatpush1.xpose.msra.mxu0 0.0
    %193 = vmatprep.subr.mxu0 0.0
    %194 = vmatpush1.xpose.msra.mxu0 0.0
    %195 = vmatprep.subr.mxu0 0.0
    %196 = vmatpush1.xpose.msra.mxu0 0.0
    %197 = vmatprep.subr.mxu0 0.0
    %198 = vmatpush1.xpose.msra.mxu0 0.0
    %199 = vmatprep.subr.mxu0 0.0
    %200 = vmatpush1.xpose.msra.mxu0 0.0
    %201 = vmatprep.subr.mxu0 0.0
    %202 = vmatpush1.xpose.msra.mxu0 0.0
    %203 = vmatprep.subr.mxu0 0.0
    %204 = vmatpush1.xpose.msra.mxu0 0.0
    %205 = vmatprep.subr.mxu0 0.0
    %206 = vmatpush1.xpose.msra.mxu0 0.0
    %207 = vmatprep.subr.mxu0 0.0
    %208 = vmatpush1.xpose.msra.mxu0 0.0
    %209 = vmatprep.subr.mxu0 0.0
    %210 = vmatpush1.xpose.msra.mxu0 0.0
    %211 = vmatprep.subr.mxu0 0.0
    %212 = vmatpush1.xpose.msra.mxu0 0.0
    %213 = vmatprep.subr.mxu0 0.0
    %214 = vmatpush1.xpose.msra.mxu0 0.0
    %215 = vmatprep.subr.mxu0 0.0
    %216 = vmatpush1.xpose.msra.mxu0 0.0
    %217 = vmatprep.subr.mxu0 0.0
    %218 = vmatpush1.xpose.msra.mxu0 0.0
    %219 = vmatprep.subr.mxu0 0.0
    %220 = vmatpush1.xpose.msra.mxu0 0.0
    %221 = vmatprep.mubr.f32.mxu0 0.0
    %222 = vmatmul.mubr.f32.gmra.mrb[0].mxu0 %v149
    %v223 = vpop.f32.mrb[0].mxu0
    %v224 = vadd.f32 0.0, %v223
    %v225 = vpop.f32.mrb[0].mxu0
    %226 = vmatprep.mubr.f32.mxu0 0.0
    %227 = vmatmul.mubr.f32.gmra.mrb[0].mxu0 %v151
    %v228 = vpop.f32.mrb[0].mxu0
    %v229 = vadd.f32 0.0, %v228
    %v230 = vpop.f32.mrb[0].mxu0
    %231 = vdwg.mxu0
    %v232 = vmul.f32 %v224, 0.35355338
    %v233 = vmul.f32 %v229, 0.35355338
    %234 = vrot.lane.b32.xlu0 %v134, 120
    %v235 = vpop.permute.xlu0 %234
    %236 = vrot.lane.b32.xlu0 %v139, 120
    %v237 = vpop.permute.xlu0 %236
    %238 = vrot.lane.b32.xlu0 %v134, 88
    %v239 = vpop.permute.xlu0 %238
    %240 = vrot.lane.b32.xlu0 %v139, 88
    %v241 = vpop.permute.xlu0 %240
    %v242 = vsel %vm148, %v235, 0
    %v244 = vsel %vm148, %v237, 0
    %v246 = vsel %vm148, %v239, 0
    %v248 = vsel %vm148, %v241, 0
    %250 = vmatprep.subr.mxu0 0.0
    %251 = vmatpush1.xpose.msra.mxu0 %v246
    %252 = vmatprep.subr.mxu0 0.0
    %253 = vmatpush1.xpose.msra.mxu0 %v248
    %254 = vmatprep.subr.mxu0 0.0
    %255 = vmatpush1.xpose.msra.mxu0 0.0
    %256 = vmatprep.subr.mxu0 0.0
    %257 = vmatpush1.xpose.msra.mxu0 0.0
    %258 = vmatprep.subr.mxu0 0.0
    %259 = vmatpush1.xpose.msra.mxu0 0.0
    %260 = vmatprep.subr.mxu0 0.0
    %261 = vmatpush1.xpose.msra.mxu0 0.0
    %262 = vmatprep.subr.mxu0 0.0
    %263 = vmatpush1.xpose.msra.mxu0 0.0
    %264 = vmatprep.subr.mxu0 0.0
    %265 = vmatpush1.xpose.msra.mxu0 0.0
    %266 = vmatprep.subr.mxu0 0.0
    %267 = vmatpush1.xpose.msra.mxu0 0.0
    %268 = vmatprep.subr.mxu0 0.0
    %269 = vmatpush1.xpose.msra.mxu0 0.0
    %270 = vmatprep.subr.mxu0 0.0
    %271 = vmatpush1.xpose.msra.mxu0 0.0
    %272 = vmatprep.subr.mxu0 0.0
    %273 = vmatpush1.xpose.msra.mxu0 0.0
    %274 = vmatprep.subr.mxu0 0.0
    %275 = vmatpush1.xpose.msra.mxu0 0.0
    %276 = vmatprep.subr.mxu0 0.0
    %277 = vmatpush1.xpose.msra.mxu0 0.0
    %278 = vmatprep.subr.mxu0 0.0
    %279 = vmatpush1.xpose.msra.mxu0 0.0
    %280 = vmatprep.subr.mxu0 0.0
    %281 = vmatpush1.xpose.msra.mxu0 0.0
    %282 = vmatprep.subr.mxu0 0.0
    %283 = vmatpush1.xpose.msra.mxu0 0.0
    %284 = vmatprep.subr.mxu0 0.0
    %285 = vmatpush1.xpose.msra.mxu0 0.0
    %286 = vmatprep.subr.mxu0 0.0
    %287 = vmatpush1.xpose.msra.mxu0 0.0
    %288 = vmatprep.subr.mxu0 0.0
    %289 = vmatpush1.xpose.msra.mxu0 0.0
    %290 = vmatprep.subr.mxu0 0.0
    %291 = vmatpush1.xpose.msra.mxu0 0.0
    %292 = vmatprep.subr.mxu0 0.0
    %293 = vmatpush1.xpose.msra.mxu0 0.0
    %294 = vmatprep.subr.mxu0 0.0
    %295 = vmatpush1.xpose.msra.mxu0 0.0
    %296 = vmatprep.subr.mxu0 0.0
    %297 = vmatpush1.xpose.msra.mxu0 0.0
    %298 = vmatprep.subr.mxu0 0.0
    %299 = vmatpush1.xpose.msra.mxu0 0.0
    %300 = vmatprep.subr.mxu0 0.0
    %301 = vmatpush1.xpose.msra.mxu0 0.0
    %302 = vmatprep.subr.mxu0 0.0
    %303 = vmatpush1.xpose.msra.mxu0 0.0
    %304 = vmatprep.subr.mxu0 0.0
    %305 = vmatpush1.xpose.msra.mxu0 0.0
    %306 = vmatprep.subr.mxu0 0.0
    %307 = vmatpush1.xpose.msra.mxu0 0.0
    %308 = vmatprep.subr.mxu0 0.0
    %309 = vmatpush1.xpose.msra.mxu0 0.0
    %310 = vmatprep.subr.mxu0 0.0
    %311 = vmatpush1.xpose.msra.mxu0 0.0
    %312 = vmatprep.subr.mxu0 0.0
    %313 = vmatpush1.xpose.msra.mxu0 0.0
    %314 = vmatprep.mubr.f32.mxu0 0.0
    %315 = vmatmul.mubr.f32.gmra.mrb[0].mxu0 %v242
    %v316 = vpop.f32.mrb[0].mxu0
    %v317 = vadd.f32 0.0, %v316
    %v318 = vpop.f32.mrb[0].mxu0
    %319 = vmatprep.mubr.f32.mxu0 0.0
    %320 = vmatmul.mubr.f32.gmra.mrb[0].mxu0 %v244
    %v321 = vpop.f32.mrb[0].mxu0
    %v322 = vadd.f32 0.0, %v321
    %v323 = vpop.f32.mrb[0].mxu0
    %324 = vdwg.mxu0
    %v325 = vmul.f32 %v317, 0.35355338
    %v326 = vmul.f32 %v322, 0.35355338
    %327 = vrot.lane.b32.xlu0 %v134, 112
    %v328 = vpop.permute.xlu0 %327
    %329 = vrot.lane.b32.xlu0 %v139, 112
    %v330 = vpop.permute.xlu0 %329
    %331 = vrot.lane.b32.xlu0 %v134, 80
    %v332 = vpop.permute.xlu0 %331
    %333 = vrot.lane.b32.xlu0 %v139, 80
    %v334 = vpop.permute.xlu0 %333
    %v335 = vsel %vm148, %v328, 0
    %v337 = vsel %vm148, %v330, 0
    %v339 = vsel %vm148, %v332, 0
    %v341 = vsel %vm148, %v334, 0
    %343 = vmatprep.subr.mxu0 0.0
    %344 = vmatpush1.xpose.msra.mxu0 %v339
    %345 = vmatprep.subr.mxu0 0.0
    %346 = vmatpush1.xpose.msra.mxu0 %v341
    %347 = vmatprep.subr.mxu0 0.0
    %348 = vmatpush1.xpose.msra.mxu0 0.0
    %349 = vmatprep.subr.mxu0 0.0
    %350 = vmatpush1.xpose.msra.mxu0 0.0
    %351 = vmatprep.subr.mxu0 0.0
    %352 = vmatpush1.xpose.msra.mxu0 0.0
    %353 = vmatprep.subr.mxu0 0.0
    %354 = vmatpush1.xpose.msra.mxu0 0.0
    %355 = vmatprep.subr.mxu0 0.0
    %356 = vmatpush1.xpose.msra.mxu0 0.0
    %357 = vmatprep.subr.mxu0 0.0
    %358 = vmatpush1.xpose.msra.mxu0 0.0
    %359 = vmatprep.subr.mxu0 0.0
    %360 = vmatpush1.xpose.msra.mxu0 0.0
    %361 = vmatprep.subr.mxu0 0.0
    %362 = vmatpush1.xpose.msra.mxu0 0.0
    %363 = vmatprep.subr.mxu0 0.0
    %364 = vmatpush1.xpose.msra.mxu0 0.0
    %365 = vmatprep.subr.mxu0 0.0
    %366 = vmatpush1.xpose.msra.mxu0 0.0
    %367 = vmatprep.subr.mxu0 0.0
    %368 = vmatpush1.xpose.msra.mxu0 0.0
    %369 = vmatprep.subr.mxu0 0.0
    %370 = vmatpush1.xpose.msra.mxu0 0.0
    %371 = vmatprep.subr.mxu0 0.0
    %372 = vmatpush1.xpose.msra.mxu0 0.0
    %373 = vmatprep.subr.mxu0 0.0
    %374 = vmatpush1.xpose.msra.mxu0 0.0
    %375 = vmatprep.subr.mxu0 0.0
    %376 = vmatpush1.xpose.msra.mxu0 0.0
    %377 = vmatprep.subr.mxu0 0.0
    %378 = vmatpush1.xpose.msra.mxu0 0.0
    %379 = vmatprep.subr.mxu0 0.0
    %380 = vmatpush1.xpose.msra.mxu0 0.0
    %381 = vmatprep.subr.mxu0 0.0
    %382 = vmatpush1.xpose.msra.mxu0 0.0
    %383 = vmatprep.subr.mxu0 0.0
    %384 = vmatpush1.xpose.msra.mxu0 0.0
    %385 = vmatprep.subr.mxu0 0.0
    %386 = vmatpush1.xpose.msra.mxu0 0.0
    %387 = vmatprep.subr.mxu0 0.0
    %388 = vmatpush1.xpose.msra.mxu0 0.0
    %389 = vmatprep.subr.mxu0 0.0
    %390 = vmatpush1.xpose.msra.mxu0 0.0
    %391 = vmatprep.subr.mxu0 0.0
    %392 = vmatpush1.xpose.msra.mxu0 0.0
    %393 = vmatprep.subr.mxu0 0.0
    %394 = vmatpush1.xpose.msra.mxu0 0.0
    %395 = vmatprep.subr.mxu0 0.0
    %396 = vmatpush1.xpose.msra.mxu0 0.0
    %397 = vmatprep.subr.mxu0 0.0
    %398 = vmatpush1.xpose.msra.mxu0 0.0
    %399 = vmatprep.subr.mxu0 0.0
    %400 = vmatpush1.xpose.msra.mxu0 0.0
    %401 = vmatprep.subr.mxu0 0.0
    %402 = vmatpush1.xpose.msra.mxu0 0.0
    %403 = vmatprep.subr.mxu0 0.0
    %404 = vmatpush1.xpose.msra.mxu0 0.0
    %405 = vmatprep.subr.mxu0 0.0
    %406 = vmatpush1.xpose.msra.mxu0 0.0
    %407 = vmatprep.mubr.f32.mxu0 0.0
    %408 = vmatmul.mubr.f32.gmra.mrb[0].mxu0 %v335
    %v409 = vpop.f32.mrb[0].mxu0
    %v410 = vadd.f32 0.0, %v409
    %v411 = vpop.f32.mrb[0].mxu0
    %412 = vmatprep.mubr.f32.mxu0 0.0
    %413 = vmatmul.mubr.f32.gmra.mrb[0].mxu0 %v337
    %v414 = vpop.f32.mrb[0].mxu0
    %v415 = vadd.f32 0.0, %v414
    %v416 = vpop.f32.mrb[0].mxu0
    %417 = vdwg.mxu0
    %v418 = vmul.f32 %v410, 0.35355338
    %v419 = vmul.f32 %v415, 0.35355338
    %420 = vrot.lane.b32.xlu0 %v134, 104
    %v421 = vpop.permute.xlu0 %420
    %422 = vrot.lane.b32.xlu0 %v139, 104
    %v423 = vpop.permute.xlu0 %422
    %424 = vrot.lane.b32.xlu0 %v134, 72
    %v425 = vpop.permute.xlu0 %424
    %426 = vrot.lane.b32.xlu0 %v139, 72
    %v427 = vpop.permute.xlu0 %426
    %v428 = vsel %vm148, %v421, 0
    %v430 = vsel %vm148, %v423, 0
    %v432 = vsel %vm148, %v425, 0
    %v434 = vsel %vm148, %v427, 0
    %436 = vmatprep.subr.mxu0 0.0
    %437 = vmatpush1.xpose.msra.mxu0 %v432
    %438 = vmatprep.subr.mxu0 0.0
    %439 = vmatpush1.xpose.msra.mxu0 %v434
    %440 = vmatprep.subr.mxu0 0.0
    %441 = vmatpush1.xpose.msra.mxu0 0.0
    %442 = vmatprep.subr.mxu0 0.0
    %443 = vmatpush1.xpose.msra.mxu0 0.0
    %444 = vmatprep.subr.mxu0 0.0
    %445 = vmatpush1.xpose.msra.mxu0 0.0
    %446 = vmatprep.subr.mxu0 0.0
    %447 = vmatpush1.xpose.msra.mxu0 0.0
    %448 = vmatprep.subr.mxu0 0.0
    %449 = vmatpush1.xpose.msra.mxu0 0.0
    %450 = vmatprep.subr.mxu0 0.0
    %451 = vmatpush1.xpose.msra.mxu0 0.0
    %452 = vmatprep.subr.mxu0 0.0
    %453 = vmatpush1.xpose.msra.mxu0 0.0
    %454 = vmatprep.subr.mxu0 0.0
    %455 = vmatpush1.xpose.msra.mxu0 0.0
    %456 = vmatprep.subr.mxu0 0.0
    %457 = vmatpush1.xpose.msra.mxu0 0.0
    %458 = vmatprep.subr.mxu0 0.0
    %459 = vmatpush1.xpose.msra.mxu0 0.0
    %460 = vmatprep.subr.mxu0 0.0
    %461 = vmatpush1.xpose.msra.mxu0 0.0
    %462 = vmatprep.subr.mxu0 0.0
    %463 = vmatpush1.xpose.msra.mxu0 0.0
    %464 = vmatprep.subr.mxu0 0.0
    %465 = vmatpush1.xpose.msra.mxu0 0.0
    %466 = vmatprep.subr.mxu0 0.0
    %467 = vmatpush1.xpose.msra.mxu0 0.0
    %468 = vmatprep.subr.mxu0 0.0
    %469 = vmatpush1.xpose.msra.mxu0 0.0
    %470 = vmatprep.subr.mxu0 0.0
    %471 = vmatpush1.xpose.msra.mxu0 0.0
    %472 = vmatprep.subr.mxu0 0.0
    %473 = vmatpush1.xpose.msra.mxu0 0.0
    %474 = vmatprep.subr.mxu0 0.0
    %475 = vmatpush1.xpose.msra.mxu0 0.0
    %476 = vmatprep.subr.mxu0 0.0
    %477 = vmatpush1.xpose.msra.mxu0 0.0
    %478 = vmatprep.subr.mxu0 0.0
    %479 = vmatpush1.xpose.msra.mxu0 0.0
    %480 = vmatprep.subr.mxu0 0.0
    %481 = vmatpush1.xpose.msra.mxu0 0.0
    %482 = vmatprep.subr.mxu0 0.0
    %483 = vmatpush1.xpose.msra.mxu0 0.0
    %484 = vmatprep.subr.mxu0 0.0
    %485 = vmatpush1.xpose.msra.mxu0 0.0
    %486 = vmatprep.subr.mxu0 0.0
    %487 = vmatpush1.xpose.msra.mxu0 0.0
    %488 = vmatprep.subr.mxu0 0.0
    %489 = vmatpush1.xpose.msra.mxu0 0.0
    %490 = vmatprep.subr.mxu0 0.0
    %491 = vmatpush1.xpose.msra.mxu0 0.0
    %492 = vmatprep.subr.mxu0 0.0
    %493 = vmatpush1.xpose.msra.mxu0 0.0
    %494 = vmatprep.subr.mxu0 0.0
    %495 = vmatpush1.xpose.msra.mxu0 0.0
    %496 = vmatprep.subr.mxu0 0.0
    %497 = vmatpush1.xpose.msra.mxu0 0.0
    %498 = vmatprep.subr.mxu0 0.0
    %499 = vmatpush1.xpose.msra.mxu0 0.0
    %500 = vmatprep.mubr.f32.mxu0 0.0
    %501 = vmatmul.mubr.f32.gmra.mrb[0].mxu0 %v428
    %v502 = vpop.f32.mrb[0].mxu0
    %v503 = vadd.f32 0.0, %v502
    %v504 = vpop.f32.mrb[0].mxu0
    %505 = vmatprep.mubr.f32.mxu0 0.0
    %506 = vmatmul.mubr.f32.gmra.mrb[0].mxu0 %v430
    %v507 = vpop.f32.mrb[0].mxu0
    %v508 = vadd.f32 0.0, %v507
    %v509 = vpop.f32.mrb[0].mxu0
    %510 = vdwg.mxu0
    %v511 = vmul.f32 %v503, 0.35355338
    %v512 = vmul.f32 %v508, 0.35355338
    %v513 = vadd.f32 %v232, %v35
    %v514 = vadd.f32 %v233, %v36
    %v515 = vadd.f32 %v325, %v37
    %v516 = vadd.f32 %v326, %v38
    %v517 = vadd.f32 %v418, %v39
    %v518 = vadd.f32 %v419, %v40
    %v519 = vadd.f32 %v511, %v41
    %v520 = vadd.f32 %v512, %v42
    %vm521 = vcmask 130048
    %v522 = vsel %vm521, %v513, -inf
    %523 = vmax.xlane.f32.xlu0 %v522
    %v524 = vpop.xlane.xlu0 %523
    %v525 = vsel %vm521, %v514, -inf
    %526 = vmax.xlane.f32.xlu0 %v525
    %v527 = vpop.xlane.xlu0 %526
    %v528 = vsel %vm521, %v515, -inf
    %529 = vmax.xlane.f32.xlu0 %v528
    %v530 = vpop.xlane.xlu0 %529
    %v531 = vsel %vm521, %v516, -inf
    %532 = vmax.xlane.f32.xlu0 %v531
    %v533 = vpop.xlane.xlu0 %532
    %v534 = vsel %vm521, %v517, -inf
    %535 = vmax.xlane.f32.xlu0 %v534
    %v536 = vpop.xlane.xlu0 %535
    %v537 = vsel %vm521, %v518, -inf
    %538 = vmax.xlane.f32.xlu0 %v537
    %v539 = vpop.xlane.xlu0 %538
    %v540 = vsel %vm521, %v519, -inf
    %541 = vmax.xlane.f32.xlu0 %v540
    %v542 = vpop.xlane.xlu0 %541
    %v543 = vsel %vm521, %v520, -inf
    %544 = vmax.xlane.f32.xlu0 %v543
    %v545 = vpop.xlane.xlu0 %544
    %v546 = vsub.f32 %v513, %v524
    %v547 = vsub.f32 %v514, %v527
    %v548 = vsub.f32 %v515, %v530
    %v549 = vsub.f32 %v516, %v533
    %v550 = vsub.f32 %v517, %v536
    %v551 = vsub.f32 %v518, %v539
    %v552 = vsub.f32 %v519, %v542
    %v553 = vsub.f32 %v520, %v545
    %v554 = vmul.f32 %v546, 1.442695
    %v555 = vpow.pop %v554
    %v556 = vmul.f32 %v547, 1.442695
    %v557 = vpow.pop %v556
    %v558 = vmul.f32 %v548, 1.442695
    %v559 = vpow.pop %v558
    %v560 = vmul.f32 %v549, 1.442695
    %v561 = vpow.pop %v560
    %v562 = vmul.f32 %v550, 1.442695
    %v563 = vpow.pop %v562
    %v564 = vmul.f32 %v551, 1.442695
    %v565 = vpow.pop %v564
    %v566 = vmul.f32 %v552, 1.442695
    %v567 = vpow.pop %v566
    %v568 = vmul.f32 %v553, 1.442695
    %v569 = vpow.pop %v568
    %v570 = vsel %vm521, %v555, 0.0
    %571 = vadd.xlane.f32.xlu0 %v570
    %v572 = vpop.xlane.xlu0 %571
    %v573 = vsel %vm521, %v557, 0.0
    %574 = vadd.xlane.f32.xlu0 %v573
    %v575 = vpop.xlane.xlu0 %574
    %v576 = vsel %vm521, %v559, 0.0
    %577 = vadd.xlane.f32.xlu0 %v576
    %v578 = vpop.xlane.xlu0 %577
    %v579 = vsel %vm521, %v561, 0.0
    %580 = vadd.xlane.f32.xlu0 %v579
    %v581 = vpop.xlane.xlu0 %580
    %v582 = vsel %vm521, %v563, 0.0
    %583 = vadd.xlane.f32.xlu0 %v582
    %v584 = vpop.xlane.xlu0 %583
    %v585 = vsel %vm521, %v565, 0.0
    %586 = vadd.xlane.f32.xlu0 %v585
    %v587 = vpop.xlane.xlu0 %586
    %v588 = vsel %vm521, %v567, 0.0
    %589 = vadd.xlane.f32.xlu0 %v588
    %v590 = vpop.xlane.xlu0 %589
    %v591 = vsel %vm521, %v569, 0.0
    %592 = vadd.xlane.f32.xlu0 %v591
    %v593 = vpop.xlane.xlu0 %592
    %v594 = vrcp.pop %v572
    %v595 = vrcp.pop %v575
    %v596 = vrcp.pop %v578
    %v597 = vrcp.pop %v581
    %v598 = vrcp.pop %v584
    %v599 = vrcp.pop %v587
    %v600 = vrcp.pop %v590
    %v601 = vrcp.pop %v593
    %v602 = vmul.f32 %v555, %v594
    %v603 = vmul.f32 %v557, %v595
    %v604 = vmul.f32 %v559, %v596
    %v605 = vmul.f32 %v561, %v597
    %v606 = vmul.f32 %v563, %v598
    %v607 = vmul.f32 %v565, %v599
    %v608 = vmul.f32 %v567, %v600
    %v609 = vmul.f32 %v569, %v601
    %610 = vrot.lane.b32.xlu0 %v134, 64
    %v611 = vpop.permute.xlu0 %610
    %612 = vrot.lane.b32.xlu0 %v139, 64
    %v613 = vpop.permute.xlu0 %612
    %v617 = vsel %vm521, %v602, 0
    %v620 = vsel %vm521, %v603, 0
    %622 = vmatprep.subr.mxu0 0.0
    %623 = vmatpush1.msra.mxu0 %v611
    %624 = vmatprep.subr.mxu0 0.0
    %625 = vmatpush1.msra.mxu0 %v613
    %626 = vmatprep.subr.mxu0 0.0
    %627 = vmatpush1.msra.mxu0 0.0
    %628 = vmatprep.subr.mxu0 0.0
    %629 = vmatpush1.msra.mxu0 0.0
    %630 = vmatprep.subr.mxu0 0.0
    %631 = vmatpush1.msra.mxu0 0.0
    %632 = vmatprep.subr.mxu0 0.0
    %633 = vmatpush1.msra.mxu0 0.0
    %634 = vmatprep.subr.mxu0 0.0
    %635 = vmatpush1.msra.mxu0 0.0
    %636 = vmatprep.subr.mxu0 0.0
    %637 = vmatpush1.msra.mxu0 0.0
    %638 = vmatprep.subr.mxu0 0.0
    %639 = vmatpush1.msra.mxu0 0.0
    %640 = vmatprep.subr.mxu0 0.0
    %641 = vmatpush1.msra.mxu0 0.0
    %642 = vmatprep.subr.mxu0 0.0
    %643 = vmatpush1.msra.mxu0 0.0
    %644 = vmatprep.subr.mxu0 0.0
    %645 = vmatpush1.msra.mxu0 0.0
    %646 = vmatprep.subr.mxu0 0.0
    %647 = vmatpush1.msra.mxu0 0.0
    %648 = vmatprep.subr.mxu0 0.0
    %649 = vmatpush1.msra.mxu0 0.0
    %650 = vmatprep.subr.mxu0 0.0
    %651 = vmatpush1.msra.mxu0 0.0
    %652 = vmatprep.subr.mxu0 0.0
    %653 = vmatpush1.msra.mxu0 0.0
    %654 = vmatprep.subr.mxu0 0.0
    %655 = vmatpush1.msra.mxu0 0.0
    %656 = vmatprep.subr.mxu0 0.0
    %657 = vmatpush1.msra.mxu0 0.0
    %658 = vmatprep.subr.mxu0 0.0
    %659 = vmatpush1.msra.mxu0 0.0
    %660 = vmatprep.subr.mxu0 0.0
    %661 = vmatpush1.msra.mxu0 0.0
    %662 = vmatprep.subr.mxu0 0.0
    %663 = vmatpush1.msra.mxu0 0.0
    %664 = vmatprep.subr.mxu0 0.0
    %665 = vmatpush1.msra.mxu0 0.0
    %666 = vmatprep.subr.mxu0 0.0
    %667 = vmatpush1.msra.mxu0 0.0
    %668 = vmatprep.subr.mxu0 0.0
    %669 = vmatpush1.msra.mxu0 0.0
    %670 = vmatprep.subr.mxu0 0.0
    %671 = vmatpush1.msra.mxu0 0.0
    %672 = vmatprep.subr.mxu0 0.0
    %673 = vmatpush1.msra.mxu0 0.0
    %674 = vmatprep.subr.mxu0 0.0
    %675 = vmatpush1.msra.mxu0 0.0
    %676 = vmatprep.subr.mxu0 0.0
    %677 = vmatpush1.msra.mxu0 0.0
    %678 = vmatprep.subr.mxu0 0.0
    %679 = vmatpush1.msra.mxu0 0.0
    %680 = vmatprep.subr.mxu0 0.0
    %681 = vmatpush1.msra.mxu0 0.0
    %682 = vmatprep.subr.mxu0 0.0
    %683 = vmatpush1.msra.mxu0 0.0
    %684 = vmatprep.subr.mxu0 0.0
    %685 = vmatpush1.msra.mxu0 0.0
    %686 = vmatprep.mubr.f32.mxu0 0.0
    %687 = vmatmul.mubr.f32.gmra.mrb[0].mxu0 %v617
    %v688 = vpop.f32.mrb[0].mxu0
    %v689 = vadd.f32 0.0, %v688
    %v690 = vpop.f32.mrb[0].mxu0
    %691 = vmatprep.mubr.f32.mxu0 0.0
    %692 = vmatmul.mubr.f32.gmra.mrb[0].mxu0 %v620
    %v693 = vpop.f32.mrb[0].mxu0
    %v694 = vadd.f32 0.0, %v693
    %v695 = vpop.f32.mrb[0].mxu0
    %696 = vdwg.mxu0
    %v697 = vld [vmem:[%s4] sm:$0xff]
    %698 = vrot.lane.b32.xlu0 %v134, 56
    %v699 = vpop.permute.xlu0 %698
    %700 = vrot.lane.b32.xlu0 %v139, 56
    %v701 = vpop.permute.xlu0 %700
    %v705 = vsel %vm521, %v604, 0
    %v708 = vsel %vm521, %v605, 0
    %710 = vmatprep.subr.mxu0 0.0
    %711 = vmatpush1.msra.mxu0 %v699
    %712 = vmatprep.subr.mxu0 0.0
    %713 = vmatpush1.msra.mxu0 %v701
    %714 = vmatprep.subr.mxu0 0.0
    %715 = vmatpush1.msra.mxu0 0.0
    %716 = vmatprep.subr.mxu0 0.0
    %717 = vmatpush1.msra.mxu0 0.0
    %718 = vmatprep.subr.mxu0 0.0
    %719 = vmatpush1.msra.mxu0 0.0
    %720 = vmatprep.subr.mxu0 0.0
    %721 = vmatpush1.msra.mxu0 0.0
    %722 = vmatprep.subr.mxu0 0.0
    %723 = vmatpush1.msra.mxu0 0.0
    %724 = vmatprep.subr.mxu0 0.0
    %725 = vmatpush1.msra.mxu0 0.0
    %726 = vmatprep.subr.mxu0 0.0
    %727 = vmatpush1.msra.mxu0 0.0
    %728 = vmatprep.subr.mxu0 0.0
    %729 = vmatpush1.msra.mxu0 0.0
    %730 = vmatprep.subr.mxu0 0.0
    %731 = vmatpush1.msra.mxu0 0.0
    %732 = vmatprep.subr.mxu0 0.0
    %733 = vmatpush1.msra.mxu0 0.0
    %734 = vmatprep.subr.mxu0 0.0
    %735 = vmatpush1.msra.mxu0 0.0
    %736 = vmatprep.subr.mxu0 0.0
    %737 = vmatpush1.msra.mxu0 0.0
    %738 = vmatprep.subr.mxu0 0.0
    %739 = vmatpush1.msra.mxu0 0.0
    %740 = vmatprep.subr.mxu0 0.0
    %741 = vmatpush1.msra.mxu0 0.0
    %742 = vmatprep.subr.mxu0 0.0
    %743 = vmatpush1.msra.mxu0 0.0
    %744 = vmatprep.subr.mxu0 0.0
    %745 = vmatpush1.msra.mxu0 0.0
    %746 = vmatprep.subr.mxu0 0.0
    %747 = vmatpush1.msra.mxu0 0.0
    %748 = vmatprep.subr.mxu0 0.0
    %749 = vmatpush1.msra.mxu0 0.0
    %750 = vmatprep.subr.mxu0 0.0
    %751 = vmatpush1.msra.mxu0 0.0
    %752 = vmatprep.subr.mxu0 0.0
    %753 = vmatpush1.msra.mxu0 0.0
    %754 = vmatprep.subr.mxu0 0.0
    %755 = vmatpush1.msra.mxu0 0.0
    %756 = vmatprep.subr.mxu0 0.0
    %757 = vmatpush1.msra.mxu0 0.0
    %758 = vmatprep.subr.mxu0 0.0
    %759 = vmatpush1.msra.mxu0 0.0
    %760 = vmatprep.subr.mxu0 0.0
    %761 = vmatpush1.msra.mxu0 0.0
    %762 = vmatprep.subr.mxu0 0.0
    %763 = vmatpush1.msra.mxu0 0.0
    %764 = vmatprep.subr.mxu0 0.0
    %765 = vmatpush1.msra.mxu0 0.0
    %766 = vmatprep.subr.mxu0 0.0
    %767 = vmatpush1.msra.mxu0 0.0
    %768 = vmatprep.subr.mxu0 0.0
    %769 = vmatpush1.msra.mxu0 0.0
    %770 = vmatprep.subr.mxu0 0.0
    %771 = vmatpush1.msra.mxu0 0.0
    %772 = vmatprep.subr.mxu0 0.0
    %773 = vmatpush1.msra.mxu0 0.0
    %774 = vmatprep.mubr.f32.mxu0 0.0
    %775 = vmatmul.mubr.f32.gmra.mrb[0].mxu0 %v705
    %v776 = vpop.f32.mrb[0].mxu0
    %v777 = vadd.f32 0.0, %v776
    %v778 = vpop.f32.mrb[0].mxu0
    %779 = vmatprep.mubr.f32.mxu0 0.0
    %780 = vmatmul.mubr.f32.gmra.mrb[0].mxu0 %v708
    %v781 = vpop.f32.mrb[0].mxu0
    %v782 = vadd.f32 0.0, %v781
    %v783 = vpop.f32.mrb[0].mxu0
    %784 = vdwg.mxu0
    %v785 = vld [vmem:[%s4 + $0x8] sm:$0xff]
    %v787 = vsel %vm148, %v777, 0
    %v790 = vsel %vm148, %v782, 0
    %792 = vmatprep.subr.mxu0 0.0
    %793 = vmatpush1.msra.mxu0 %v785
    %794 = vmatprep.subr.mxu0 0.0
    %795 = vmatpush1.msra.mxu0 0.0
    %796 = vmatprep.subr.mxu0 0.0
    %797 = vmatpush1.msra.mxu0 0.0
    %798 = vmatprep.subr.mxu0 0.0
    %799 = vmatpush1.msra.mxu0 0.0
    %800 = vmatprep.subr.mxu0 0.0
    %801 = vmatpush1.msra.mxu0 0.0
    %802 = vmatprep.subr.mxu0 0.0
    %803 = vmatpush1.msra.mxu0 0.0
    %804 = vmatprep.subr.mxu0 0.0
    %805 = vmatpush1.msra.mxu0 0.0
    %806 = vmatprep.subr.mxu0 0.0
    %807 = vmatpush1.msra.mxu0 0.0
    %808 = vmatprep.subr.mxu0 0.0
    %809 = vmatpush1.msra.mxu0 0.0
    %810 = vmatprep.subr.mxu0 0.0
    %811 = vmatpush1.msra.mxu0 0.0
    %812 = vmatprep.subr.mxu0 0.0
    %813 = vmatpush1.msra.mxu0 0.0
    %814 = vmatprep.subr.mxu0 0.0
    %815 = vmatpush1.msra.mxu0 0.0
    %816 = vmatprep.subr.mxu0 0.0
    %817 = vmatpush1.msra.mxu0 0.0
    %818 = vmatprep.subr.mxu0 0.0
    %819 = vmatpush1.msra.mxu0 0.0
    %820 = vmatprep.subr.mxu0 0.0
    %821 = vmatpush1.msra.mxu0 0.0
    %822 = vmatprep.subr.mxu0 0.0
    %823 = vmatpush1.msra.mxu0 0.0
    %824 = vmatprep.subr.mxu0 0.0
    %825 = vmatpush1.msra.mxu0 0.0
    %826 = vmatprep.subr.mxu0 0.0
    %827 = vmatpush1.msra.mxu0 0.0
    %828 = vmatprep.subr.mxu0 0.0
    %829 = vmatpush1.msra.mxu0 0.0
    %830 = vmatprep.subr.mxu0 0.0
    %831 = vmatpush1.msra.mxu0 0.0
    %832 = vmatprep.subr.mxu0 0.0
    %833 = vmatpush1.msra.mxu0 0.0
    %834 = vmatprep.subr.mxu0 0.0
    %835 = vmatpush1.msra.mxu0 0.0
    %836 = vmatprep.subr.mxu0 0.0
    %837 = vmatpush1.msra.mxu0 0.0
    %838 = vmatprep.subr.mxu0 0.0
    %839 = vmatpush1.msra.mxu0 0.0
    %840 = vmatprep.subr.mxu0 0.0
    %841 = vmatpush1.msra.mxu0 0.0
    %842 = vmatprep.subr.mxu0 0.0
    %843 = vmatpush1.msra.mxu0 0.0
    %844 = vmatprep.subr.mxu0 0.0
    %845 = vmatpush1.msra.mxu0 0.0
    %846 = vmatprep.subr.mxu0 0.0
    %847 = vmatpush1.msra.mxu0 0.0
    %848 = vmatprep.subr.mxu0 0.0
    %849 = vmatpush1.msra.mxu0 0.0
    %850 = vmatprep.subr.mxu0 0.0
    %851 = vmatpush1.msra.mxu0 0.0
    %852 = vmatprep.subr.mxu0 0.0
    %853 = vmatpush1.msra.mxu0 0.0
    %854 = vmatprep.subr.mxu0 0.0
    %855 = vmatpush1.msra.mxu0 0.0
    %856 = vmatprep.mubr.f32.mxu0 0.0
    %857 = vmatmul.mubr.f32.gmra.mrb[0].mxu0 %v787
    %v858 = vpop.f32.mrb[0].mxu0
    %v859 = vadd.f32 0.0, %v858
    %v860 = vpop.f32.mrb[0].mxu0
    %861 = vmatprep.mubr.f32.mxu0 0.0
    %862 = vmatmul.mubr.f32.gmra.mrb[0].mxu0 %v790
    %v863 = vpop.f32.mrb[0].mxu0
    %v864 = vadd.f32 0.0, %v863
    %v865 = vpop.f32.mrb[0].mxu0
    %866 = vdwg.mxu0
    %v868 = vsel %vm148, %v689, 0
    %v871 = vsel %vm148, %v694, 0
    %873 = vmatprep.subr.mxu0 0.0
    %874 = vmatpush1.msra.mxu0 %v697
    %875 = vmatprep.subr.mxu0 0.0
    %876 = vmatpush1.msra.mxu0 0.0
    %877 = vmatprep.subr.mxu0 0.0
    %878 = vmatpush1.msra.mxu0 0.0
    %879 = vmatprep.subr.mxu0 0.0
    %880 = vmatpush1.msra.mxu0 0.0
    %881 = vmatprep.subr.mxu0 0.0
    %882 = vmatpush1.msra.mxu0 0.0
    %883 = vmatprep.subr.mxu0 0.0
    %884 = vmatpush1.msra.mxu0 0.0
    %885 = vmatprep.subr.mxu0 0.0
    %886 = vmatpush1.msra.mxu0 0.0
    %887 = vmatprep.subr.mxu0 0.0
    %888 = vmatpush1.msra.mxu0 0.0
    %889 = vmatprep.subr.mxu0 0.0
    %890 = vmatpush1.msra.mxu0 0.0
    %891 = vmatprep.subr.mxu0 0.0
    %892 = vmatpush1.msra.mxu0 0.0
    %893 = vmatprep.subr.mxu0 0.0
    %894 = vmatpush1.msra.mxu0 0.0
    %895 = vmatprep.subr.mxu0 0.0
    %896 = vmatpush1.msra.mxu0 0.0
    %897 = vmatprep.subr.mxu0 0.0
    %898 = vmatpush1.msra.mxu0 0.0
    %899 = vmatprep.subr.mxu0 0.0
    %900 = vmatpush1.msra.mxu0 0.0
    %901 = vmatprep.subr.mxu0 0.0
    %902 = vmatpush1.msra.mxu0 0.0
    %903 = vmatprep.subr.mxu0 0.0
    %904 = vmatpush1.msra.mxu0 0.0
    %905 = vmatprep.subr.mxu0 0.0
    %906 = vmatpush1.msra.mxu0 0.0
    %907 = vmatprep.subr.mxu0 0.0
    %908 = vmatpush1.msra.mxu0 0.0
    %909 = vmatprep.subr.mxu0 0.0
    %910 = vmatpush1.msra.mxu0 0.0
    %911 = vmatprep.subr.mxu0 0.0
    %912 = vmatpush1.msra.mxu0 0.0
    %913 = vmatprep.subr.mxu0 0.0
    %914 = vmatpush1.msra.mxu0 0.0
    %915 = vmatprep.subr.mxu0 0.0
    %916 = vmatpush1.msra.mxu0 0.0
    %917 = vmatprep.subr.mxu0 0.0
    %918 = vmatpush1.msra.mxu0 0.0
    %919 = vmatprep.subr.mxu0 0.0
    %920 = vmatpush1.msra.mxu0 0.0
    %921 = vmatprep.subr.mxu0 0.0
    %922 = vmatpush1.msra.mxu0 0.0
    %923 = vmatprep.subr.mxu0 0.0
    %924 = vmatpush1.msra.mxu0 0.0
    %925 = vmatprep.subr.mxu0 0.0
    %926 = vmatpush1.msra.mxu0 0.0
    %927 = vmatprep.subr.mxu0 0.0
    %928 = vmatpush1.msra.mxu0 0.0
    %929 = vmatprep.subr.mxu0 0.0
    %930 = vmatpush1.msra.mxu0 0.0
    %931 = vmatprep.subr.mxu0 0.0
    %932 = vmatpush1.msra.mxu0 0.0
    %933 = vmatprep.subr.mxu0 0.0
    %934 = vmatpush1.msra.mxu0 0.0
    %935 = vmatprep.subr.mxu0 0.0
    %936 = vmatpush1.msra.mxu0 0.0
    %937 = vmatprep.mubr.f32.mxu0 0.0
    %938 = vmatmul.mubr.f32.gmra.mrb[0].mxu0 %v868
    %v939 = vpop.f32.mrb[0].mxu0
    %v940 = vadd.f32 %v859, %v939
    %v941 = vpop.f32.mrb[0].mxu0
    %942 = vmatprep.mubr.f32.mxu0 0.0
    %943 = vmatmul.mubr.f32.gmra.mrb[0].mxu0 %v871
    %v944 = vpop.f32.mrb[0].mxu0
    %v945 = vadd.f32 %v864, %v944
    %v946 = vpop.f32.mrb[0].mxu0
    %947 = vdwg.mxu0
    %948 = vrot.lane.b32.xlu0 %v134, 48
    %v949 = vpop.permute.xlu0 %948
    %950 = vrot.lane.b32.xlu0 %v139, 48
    %v951 = vpop.permute.xlu0 %950
    %v955 = vsel %vm521, %v606, 0
    %v958 = vsel %vm521, %v607, 0
    %960 = vmatprep.subr.mxu0 0.0
    %961 = vmatpush1.msra.mxu0 %v949
    %962 = vmatprep.subr.mxu0 0.0
    %963 = vmatpush1.msra.mxu0 %v951
    %964 = vmatprep.subr.mxu0 0.0
    %965 = vmatpush1.msra.mxu0 0.0
    %966 = vmatprep.subr.mxu0 0.0
    %967 = vmatpush1.msra.mxu0 0.0
    %968 = vmatprep.subr.mxu0 0.0
    %969 = vmatpush1.msra.mxu0 0.0
    %970 = vmatprep.subr.mxu0 0.0
    %971 = vmatpush1.msra.mxu0 0.0
    %972 = vmatprep.subr.mxu0 0.0
    %973 = vmatpush1.msra.mxu0 0.0
    %974 = vmatprep.subr.mxu0 0.0
    %975 = vmatpush1.msra.mxu0 0.0
    %976 = vmatprep.subr.mxu0 0.0
    %977 = vmatpush1.msra.mxu0 0.0
    %978 = vmatprep.subr.mxu0 0.0
    %979 = vmatpush1.msra.mxu0 0.0
    %980 = vmatprep.subr.mxu0 0.0
    %981 = vmatpush1.msra.mxu0 0.0
    %982 = vmatprep.subr.mxu0 0.0
    %983 = vmatpush1.msra.mxu0 0.0
    %984 = vmatprep.subr.mxu0 0.0
    %985 = vmatpush1.msra.mxu0 0.0
    %986 = vmatprep.subr.mxu0 0.0
    %987 = vmatpush1.msra.mxu0 0.0
    %988 = vmatprep.subr.mxu0 0.0
    %989 = vmatpush1.msra.mxu0 0.0
    %990 = vmatprep.subr.mxu0 0.0
    %991 = vmatpush1.msra.mxu0 0.0
    %992 = vmatprep.subr.mxu0 0.0
    %993 = vmatpush1.msra.mxu0 0.0
    %994 = vmatprep.subr.mxu0 0.0
    %995 = vmatpush1.msra.mxu0 0.0
    %996 = vmatprep.subr.mxu0 0.0
    %997 = vmatpush1.msra.mxu0 0.0
    %998 = vmatprep.subr.mxu0 0.0
    %999 = vmatpush1.msra.mxu0 0.0
    %1000 = vmatprep.subr.mxu0 0.0
    %1001 = vmatpush1.msra.mxu0 0.0
    %1002 = vmatprep.subr.mxu0 0.0
    %1003 = vmatpush1.msra.mxu0 0.0
    %1004 = vmatprep.subr.mxu0 0.0
    %1005 = vmatpush1.msra.mxu0 0.0
    %1006 = vmatprep.subr.mxu0 0.0
    %1007 = vmatpush1.msra.mxu0 0.0
    %1008 = vmatprep.subr.mxu0 0.0
    %1009 = vmatpush1.msra.mxu0 0.0
    %1010 = vmatprep.subr.mxu0 0.0
    %1011 = vmatpush1.msra.mxu0 0.0
    %1012 = vmatprep.subr.mxu0 0.0
    %1013 = vmatpush1.msra.mxu0 0.0
    %1014 = vmatprep.subr.mxu0 0.0
    %1015 = vmatpush1.msra.mxu0 0.0
    %1016 = vmatprep.subr.mxu0 0.0
    %1017 = vmatpush1.msra.mxu0 0.0
    %1018 = vmatprep.subr.mxu0 0.0
    %1019 = vmatpush1.msra.mxu0 0.0
    %1020 = vmatprep.subr.mxu0 0.0
    %1021 = vmatpush1.msra.mxu0 0.0
    %1022 = vmatprep.subr.mxu0 0.0
    %1023 = vmatpush1.msra.mxu0 0.0
    %1024 = vmatprep.mubr.f32.mxu0 0.0
    %1025 = vmatmul.mubr.f32.gmra.mrb[0].mxu0 %v955
    %v1026 = vpop.f32.mrb[0].mxu0
    %v1027 = vadd.f32 0.0, %v1026
    %v1028 = vpop.f32.mrb[0].mxu0
    %1029 = vmatprep.mubr.f32.mxu0 0.0
    %1030 = vmatmul.mubr.f32.gmra.mrb[0].mxu0 %v958
    %v1031 = vpop.f32.mrb[0].mxu0
    %v1032 = vadd.f32 0.0, %v1031
    %v1033 = vpop.f32.mrb[0].mxu0
    %1034 = vdwg.mxu0
    %v1035 = vld [vmem:[%s4 + $0x10] sm:$0xff]
    %v1037 = vsel %vm148, %v1027, 0
    %v1040 = vsel %vm148, %v1032, 0
    %1042 = vmatprep.subr.mxu0 0.0
    %1043 = vmatpush1.msra.mxu0 %v1035
    %1044 = vmatprep.subr.mxu0 0.0
    %1045 = vmatpush1.msra.mxu0 0.0
    %1046 = vmatprep.subr.mxu0 0.0
    %1047 = vmatpush1.msra.mxu0 0.0
    %1048 = vmatprep.subr.mxu0 0.0
    %1049 = vmatpush1.msra.mxu0 0.0
    %1050 = vmatprep.subr.mxu0 0.0
    %1051 = vmatpush1.msra.mxu0 0.0
    %1052 = vmatprep.subr.mxu0 0.0
    %1053 = vmatpush1.msra.mxu0 0.0
    %1054 = vmatprep.subr.mxu0 0.0
    %1055 = vmatpush1.msra.mxu0 0.0
    %1056 = vmatprep.subr.mxu0 0.0
    %1057 = vmatpush1.msra.mxu0 0.0
    %1058 = vmatprep.subr.mxu0 0.0
    %1059 = vmatpush1.msra.mxu0 0.0
    %1060 = vmatprep.subr.mxu0 0.0
    %1061 = vmatpush1.msra.mxu0 0.0
    %1062 = vmatprep.subr.mxu0 0.0
    %1063 = vmatpush1.msra.mxu0 0.0
    %1064 = vmatprep.subr.mxu0 0.0
    %1065 = vmatpush1.msra.mxu0 0.0
    %1066 = vmatprep.subr.mxu0 0.0
    %1067 = vmatpush1.msra.mxu0 0.0
    %1068 = vmatprep.subr.mxu0 0.0
    %1069 = vmatpush1.msra.mxu0 0.0
    %1070 = vmatprep.subr.mxu0 0.0
    %1071 = vmatpush1.msra.mxu0 0.0
    %1072 = vmatprep.subr.mxu0 0.0
    %1073 = vmatpush1.msra.mxu0 0.0
    %1074 = vmatprep.subr.mxu0 0.0
    %1075 = vmatpush1.msra.mxu0 0.0
    %1076 = vmatprep.subr.mxu0 0.0
    %1077 = vmatpush1.msra.mxu0 0.0
    %1078 = vmatprep.subr.mxu0 0.0
    %1079 = vmatpush1.msra.mxu0 0.0
    %1080 = vmatprep.subr.mxu0 0.0
    %1081 = vmatpush1.msra.mxu0 0.0
    %1082 = vmatprep.subr.mxu0 0.0
    %1083 = vmatpush1.msra.mxu0 0.0
    %1084 = vmatprep.subr.mxu0 0.0
    %1085 = vmatpush1.msra.mxu0 0.0
    %1086 = vmatprep.subr.mxu0 0.0
    %1087 = vmatpush1.msra.mxu0 0.0
    %1088 = vmatprep.subr.mxu0 0.0
    %1089 = vmatpush1.msra.mxu0 0.0
    %1090 = vmatprep.subr.mxu0 0.0
    %1091 = vmatpush1.msra.mxu0 0.0
    %1092 = vmatprep.subr.mxu0 0.0
    %1093 = vmatpush1.msra.mxu0 0.0
    %1094 = vmatprep.subr.mxu0 0.0
    %1095 = vmatpush1.msra.mxu0 0.0
    %1096 = vmatprep.subr.mxu0 0.0
    %1097 = vmatpush1.msra.mxu0 0.0
    %1098 = vmatprep.subr.mxu0 0.0
    %1099 = vmatpush1.msra.mxu0 0.0
    %1100 = vmatprep.subr.mxu0 0.0
    %1101 = vmatpush1.msra.mxu0 0.0
    %1102 = vmatprep.subr.mxu0 0.0
    %1103 = vmatpush1.msra.mxu0 0.0
    %1104 = vmatprep.subr.mxu0 0.0
    %1105 = vmatpush1.msra.mxu0 0.0
    %1106 = vmatprep.mubr.f32.mxu0 0.0
    %1107 = vmatmul.mubr.f32.gmra.mrb[0].mxu0 %v1037
    %v1108 = vpop.f32.mrb[0].mxu0
    %v1109 = vadd.f32 0.0, %v1108
    %v1110 = vpop.f32.mrb[0].mxu0
    %1111 = vmatprep.mubr.f32.mxu0 0.0
    %1112 = vmatmul.mubr.f32.gmra.mrb[0].mxu0 %v1040
    %v1113 = vpop.f32.mrb[0].mxu0
    %v1114 = vadd.f32 0.0, %v1113
    %v1115 = vpop.f32.mrb[0].mxu0
    %1116 = vdwg.mxu0
    %v1117 = vadd.f32 %v940, %v1109
    %v1118 = vadd.f32 %v945, %v1114
    %1119 = vrot.lane.b32.xlu0 %v134, 40
    %v1120 = vpop.permute.xlu0 %1119
    %1121 = vrot.lane.b32.xlu0 %v139, 40
    %v1122 = vpop.permute.xlu0 %1121
    %v1126 = vsel %vm521, %v608, 0
    %v1129 = vsel %vm521, %v609, 0
    %1131 = vmatprep.subr.mxu0 0.0
    %1132 = vmatpush1.msra.mxu0 %v1120
    %1133 = vmatprep.subr.mxu0 0.0
    %1134 = vmatpush1.msra.mxu0 %v1122
    %1135 = vmatprep.subr.mxu0 0.0
    %1136 = vmatpush1.msra.mxu0 0.0
    %1137 = vmatprep.subr.mxu0 0.0
    %1138 = vmatpush1.msra.mxu0 0.0
    %1139 = vmatprep.subr.mxu0 0.0
    %1140 = vmatpush1.msra.mxu0 0.0
    %1141 = vmatprep.subr.mxu0 0.0
    %1142 = vmatpush1.msra.mxu0 0.0
    %1143 = vmatprep.subr.mxu0 0.0
    %1144 = vmatpush1.msra.mxu0 0.0
    %1145 = vmatprep.subr.mxu0 0.0
    %1146 = vmatpush1.msra.mxu0 0.0
    %1147 = vmatprep.subr.mxu0 0.0
    %1148 = vmatpush1.msra.mxu0 0.0
    %1149 = vmatprep.subr.mxu0 0.0
    %1150 = vmatpush1.msra.mxu0 0.0
    %1151 = vmatprep.subr.mxu0 0.0
    %1152 = vmatpush1.msra.mxu0 0.0
    %1153 = vmatprep.subr.mxu0 0.0
    %1154 = vmatpush1.msra.mxu0 0.0
    %1155 = vmatprep.subr.mxu0 0.0
    %1156 = vmatpush1.msra.mxu0 0.0
    %1157 = vmatprep.subr.mxu0 0.0
    %1158 = vmatpush1.msra.mxu0 0.0
    %1159 = vmatprep.subr.mxu0 0.0
    %1160 = vmatpush1.msra.mxu0 0.0
    %1161 = vmatprep.subr.mxu0 0.0
    %1162 = vmatpush1.msra.mxu0 0.0
    %1163 = vmatprep.subr.mxu0 0.0
    %1164 = vmatpush1.msra.mxu0 0.0
    %1165 = vmatprep.subr.mxu0 0.0
    %1166 = vmatpush1.msra.mxu0 0.0
    %1167 = vmatprep.subr.mxu0 0.0
    %1168 = vmatpush1.msra.mxu0 0.0
    %1169 = vmatprep.subr.mxu0 0.0
    %1170 = vmatpush1.msra.mxu0 0.0
    %1171 = vmatprep.subr.mxu0 0.0
    %1172 = vmatpush1.msra.mxu0 0.0
    %1173 = vmatprep.subr.mxu0 0.0
    %1174 = vmatpush1.msra.mxu0 0.0
    %1175 = vmatprep.subr.mxu0 0.0
    %1176 = vmatpush1.msra.mxu0 0.0
    %1177 = vmatprep.subr.mxu0 0.0
    %1178 = vmatpush1.msra.mxu0 0.0
    %1179 = vmatprep.subr.mxu0 0.0
    %1180 = vmatpush1.msra.mxu0 0.0
    %1181 = vmatprep.subr.mxu0 0.0
    %1182 = vmatpush1.msra.mxu0 0.0
    %1183 = vmatprep.subr.mxu0 0.0
    %1184 = vmatpush1.msra.mxu0 0.0
    %1185 = vmatprep.subr.mxu0 0.0
    %1186 = vmatpush1.msra.mxu0 0.0
    %1187 = vmatprep.subr.mxu0 0.0
    %1188 = vmatpush1.msra.mxu0 0.0
    %1189 = vmatprep.subr.mxu0 0.0
    %1190 = vmatpush1.msra.mxu0 0.0
    %1191 = vmatprep.subr.mxu0 0.0
    %1192 = vmatpush1.msra.mxu0 0.0
    %1193 = vmatprep.subr.mxu0 0.0
    %1194 = vmatpush1.msra.mxu0 0.0
    %1195 = vmatprep.mubr.f32.mxu0 0.0
    %1196 = vmatmul.mubr.f32.gmra.mrb[0].mxu0 %v1126
    %v1197 = vpop.f32.mrb[0].mxu0
    %v1198 = vadd.f32 0.0, %v1197
    %v1199 = vpop.f32.mrb[0].mxu0
    %1200 = vmatprep.mubr.f32.mxu0 0.0
    %1201 = vmatmul.mubr.f32.gmra.mrb[0].mxu0 %v1129
    %v1202 = vpop.f32.mrb[0].mxu0
    %v1203 = vadd.f32 0.0, %v1202
    %v1204 = vpop.f32.mrb[0].mxu0
    %1205 = vdwg.mxu0
    %v1206 = vld [vmem:[%s4 + $0x18] sm:$0xff]
    %v1208 = vsel %vm148, %v1198, 0
    %v1211 = vsel %vm148, %v1203, 0
    %1213 = vmatprep.subr.mxu0 0.0
    %1214 = vmatpush1.msra.mxu0 %v1206
    %1215 = vmatprep.subr.mxu0 0.0
    %1216 = vmatpush1.msra.mxu0 0.0
    %1217 = vmatprep.subr.mxu0 0.0
    %1218 = vmatpush1.msra.mxu0 0.0
    %1219 = vmatprep.subr.mxu0 0.0
    %1220 = vmatpush1.msra.mxu0 0.0
    %1221 = vmatprep.subr.mxu0 0.0
    %1222 = vmatpush1.msra.mxu0 0.0
    %1223 = vmatprep.subr.mxu0 0.0
    %1224 = vmatpush1.msra.mxu0 0.0
    %1225 = vmatprep.subr.mxu0 0.0
    %1226 = vmatpush1.msra.mxu0 0.0
    %1227 = vmatprep.subr.mxu0 0.0
    %1228 = vmatpush1.msra.mxu0 0.0
    %1229 = vmatprep.subr.mxu0 0.0
    %1230 = vmatpush1.msra.mxu0 0.0
    %1231 = vmatprep.subr.mxu0 0.0
    %1232 = vmatpush1.msra.mxu0 0.0
    %1233 = vmatprep.subr.mxu0 0.0
    %1234 = vmatpush1.msra.mxu0 0.0
    %1235 = vmatprep.subr.mxu0 0.0
    %1236 = vmatpush1.msra.mxu0 0.0
    %1237 = vmatprep.subr.mxu0 0.0
    %1238 = vmatpush1.msra.mxu0 0.0
    %1239 = vmatprep.subr.mxu0 0.0
    %1240 = vmatpush1.msra.mxu0 0.0
    %1241 = vmatprep.subr.mxu0 0.0
    %1242 = vmatpush1.msra.mxu0 0.0
    %1243 = vmatprep.subr.mxu0 0.0
    %1244 = vmatpush1.msra.mxu0 0.0
    %1245 = vmatprep.subr.mxu0 0.0
    %1246 = vmatpush1.msra.mxu0 0.0
    %1247 = vmatprep.subr.mxu0 0.0
    %1248 = vmatpush1.msra.mxu0 0.0
    %1249 = vmatprep.subr.mxu0 0.0
    %1250 = vmatpush1.msra.mxu0 0.0
    %1251 = vmatprep.subr.mxu0 0.0
    %1252 = vmatpush1.msra.mxu0 0.0
    %1253 = vmatprep.subr.mxu0 0.0
    %1254 = vmatpush1.msra.mxu0 0.0
    %1255 = vmatprep.subr.mxu0 0.0
    %1256 = vmatpush1.msra.mxu0 0.0
    %1257 = vmatprep.subr.mxu0 0.0
    %1258 = vmatpush1.msra.mxu0 0.0
    %1259 = vmatprep.subr.mxu0 0.0
    %1260 = vmatpush1.msra.mxu0 0.0
    %1261 = vmatprep.subr.mxu0 0.0
    %1262 = vmatpush1.msra.mxu0 0.0
    %1263 = vmatprep.subr.mxu0 0.0
    %1264 = vmatpush1.msra.mxu0 0.0
    %1265 = vmatprep.subr.mxu0 0.0
    %1266 = vmatpush1.msra.mxu0 0.0
    %1267 = vmatprep.subr.mxu0 0.0
    %1268 = vmatpush1.msra.mxu0 0.0
    %1269 = vmatprep.subr.mxu0 0.0
    %1270 = vmatpush1.msra.mxu0 0.0
    %1271 = vmatprep.subr.mxu0 0.0
    %1272 = vmatpush1.msra.mxu0 0.0
    %1273 = vmatprep.subr.mxu0 0.0
    %1274 = vmatpush1.msra.mxu0 0.0
    %1275 = vmatprep.subr.mxu0 0.0
    %1276 = vmatpush1.msra.mxu0 0.0
    %1277 = vmatprep.mubr.f32.mxu0 0.0
    %1278 = vmatmul.mubr.f32.gmra.mrb[0].mxu0 %v1208
    %v1279 = vpop.f32.mrb[0].mxu0
    %v1280 = vadd.f32 0.0, %v1279
    %v1281 = vpop.f32.mrb[0].mxu0
    %1282 = vmatprep.mubr.f32.mxu0 0.0
    %1283 = vmatmul.mubr.f32.gmra.mrb[0].mxu0 %v1211
    %v1284 = vpop.f32.mrb[0].mxu0
    %v1285 = vadd.f32 0.0, %v1284
    %v1286 = vpop.f32.mrb[0].mxu0
    %1287 = vdwg.mxu0
    %v1288 = vadd.f32 %v1117, %v1280
    %v1289 = vadd.f32 %v1118, %v1285
    %v1290 = vlaneseq
    %v1291 = vshrl.u32 %v1290, 7
    %v1292 = vsub.s32 0, %v1291
    %v1293 = vrot.slane %v43, %v1292
    %v1294 = vadd.f32 %v1288, %v1293
    %v1295 = vadd.f32 %v1289, %v1293
    %v1296 = vadd.f32 %v33, %v1294
    %v1297 = vadd.f32 %v34, %v1295
    %v1298 = vsel %vm60, %v1296, 0.0
    %1299 = vadd.xlane.f32.xlu0 %v1298
    %v1300 = vpop.xlane.xlu0 %1299
    %v1301 = vsel %vm60, %v1297, 0.0
    %1302 = vadd.xlane.f32.xlu0 %v1301
    %v1303 = vpop.xlane.xlu0 %1302
    %v1304 = vrcp.pop 32.0
    %v1305 = vmul.f32 %v1300, %v1304
    %v1306 = vmul.f32 %v1303, %v1304
    %v1307 = vsub.f32 %v1296, %v1305
    %v1308 = vsub.f32 %v1297, %v1306
    %v1309 = vmul.f32 %v1307, %v1307
    %v1310 = vmul.f32 %v1308, %v1308
    %v1311 = vsel %vm60, %v1309, 0.0
    %1312 = vadd.xlane.f32.xlu0 %v1311
    %v1313 = vpop.xlane.xlu0 %1312
    %v1314 = vsel %vm60, %v1310, 0.0
    %1315 = vadd.xlane.f32.xlu0 %v1314
    %v1316 = vpop.xlane.xlu0 %1315
    %v1317 = vmul.f32 %v1313, %v1304
    %v1318 = vmul.f32 %v1316, %v1304
    %v1319 = vlaneseq
    %v1320 = vshrl.u32 %v1319, 7
    %v1321 = vsub.s32 0, %v1320
    %v1322 = vrot.slane %v44, %v1321
    %v1323 = vmul.f32 %v1322, %v1307
    %v1324 = vmul.f32 %v1322, %v1308
    %v1325 = vadd.f32 %v1317, 1e-06
    %v1326 = vadd.f32 %v1318, 1e-06
    %v1327 = vrsqrt.pop %v1325
    %v1328 = vrsqrt.pop %v1326
    %v1329 = vmul.f32 %v1323, %v1327
    %v1330 = vmul.f32 %v1324, %v1328
    %v1331 = vlaneseq
    %v1332 = vshrl.u32 %v1331, 7
    %v1333 = vsub.s32 0, %v1332
    %v1334 = vrot.slane %v45, %v1333
    %v1335 = vadd.f32 %v1329, %v1334
    %v1336 = vadd.f32 %v1330, %v1334
    %v1337 = vld [vmem:[%s5] sm:$0xff]
    %v1338 = vld [vmem:[%s5 + $0x8] sm:$0xff]
    %v1339 = vld [vmem:[%s5 + $0x10] sm:$0xff]
    %v1340 = vld [vmem:[%s5 + $0x18] sm:$0xff]
    %v1341 = vld [vmem:[%s6] sm:$0x1]
    %v1343 = vlaneseq
    %v1344 = vshrl.u32 %v1343, 7
    %v1345 = vsub.s32 0, %v1344
    %v1346 = vrot.slane %v1341, %v1345
    %v1349 = vsel %vm60, %v1335, 0
    %v1352 = vsel %vm60, %v1336, 0
    %1354 = vmatprep.subr.mxu0 0.0
    %1355 = vmatpush1.msra.mxu0 %v1337
    %1356 = vmatprep.subr.mxu0 0.0
    %1357 = vmatpush1.msra.mxu0 %v1338
    %1358 = vmatprep.subr.mxu0 0.0
    %1359 = vmatpush1.msra.mxu0 %v1339
    %1360 = vmatprep.subr.mxu0 0.0
    %1361 = vmatpush1.msra.mxu0 %v1340
    %1362 = vmatprep.subr.mxu0 0.0
    %1363 = vmatpush1.msra.mxu0 0.0
    %1364 = vmatprep.subr.mxu0 0.0
    %1365 = vmatpush1.msra.mxu0 0.0
    %1366 = vmatprep.subr.mxu0 0.0
    %1367 = vmatpush1.msra.mxu0 0.0
    %1368 = vmatprep.subr.mxu0 0.0
    %1369 = vmatpush1.msra.mxu0 0.0
    %1370 = vmatprep.subr.mxu0 0.0
    %1371 = vmatpush1.msra.mxu0 0.0
    %1372 = vmatprep.subr.mxu0 0.0
    %1373 = vmatpush1.msra.mxu0 0.0
    %1374 = vmatprep.subr.mxu0 0.0
    %1375 = vmatpush1.msra.mxu0 0.0
    %1376 = vmatprep.subr.mxu0 0.0
    %1377 = vmatpush1.msra.mxu0 0.0
    %1378 = vmatprep.subr.mxu0 0.0
    %1379 = vmatpush1.msra.mxu0 0.0
    %1380 = vmatprep.subr.mxu0 0.0
    %1381 = vmatpush1.msra.mxu0 0.0
    %1382 = vmatprep.subr.mxu0 0.0
    %1383 = vmatpush1.msra.mxu0 0.0
    %1384 = vmatprep.subr.mxu0 0.0
    %1385 = vmatpush1.msra.mxu0 0.0
    %1386 = vmatprep.subr.mxu0 0.0
    %1387 = vmatpush1.msra.mxu0 0.0
    %1388 = vmatprep.subr.mxu0 0.0
    %1389 = vmatpush1.msra.mxu0 0.0
    %1390 = vmatprep.subr.mxu0 0.0
    %1391 = vmatpush1.msra.mxu0 0.0
    %1392 = vmatprep.subr.mxu0 0.0
    %1393 = vmatpush1.msra.mxu0 0.0
    %1394 = vmatprep.subr.mxu0 0.0
    %1395 = vmatpush1.msra.mxu0 0.0
    %1396 = vmatprep.subr.mxu0 0.0
    %1397 = vmatpush1.msra.mxu0 0.0
    %1398 = vmatprep.subr.mxu0 0.0
    %1399 = vmatpush1.msra.mxu0 0.0
    %1400 = vmatprep.subr.mxu0 0.0
    %1401 = vmatpush1.msra.mxu0 0.0
    %1402 = vmatprep.subr.mxu0 0.0
    %1403 = vmatpush1.msra.mxu0 0.0
    %1404 = vmatprep.subr.mxu0 0.0
    %1405 = vmatpush1.msra.mxu0 0.0
    %1406 = vmatprep.subr.mxu0 0.0
    %1407 = vmatpush1.msra.mxu0 0.0
    %1408 = vmatprep.subr.mxu0 0.0
    %1409 = vmatpush1.msra.mxu0 0.0
    %1410 = vmatprep.subr.mxu0 0.0
    %1411 = vmatpush1.msra.mxu0 0.0
    %1412 = vmatprep.subr.mxu0 0.0
    %1413 = vmatpush1.msra.mxu0 0.0
    %1414 = vmatprep.subr.mxu0 0.0
    %1415 = vmatpush1.msra.mxu0 0.0
    %1416 = vmatprep.subr.mxu0 0.0
    %1417 = vmatpush1.msra.mxu0 0.0
    %1418 = vmatprep.mubr.f32.mxu0 0.0
    %1419 = vmatmul.mubr.f32.gmra.mrb[0].mxu0 %v1349
    %v1420 = vpop.f32.mrb[0].mxu0
    %v1421 = vadd.f32 %v1346, %v1420
    %v1422 = vpop.f32.mrb[0].mxu0
    %1423 = vmatprep.mubr.f32.mxu0 0.0
    %1424 = vmatmul.mubr.f32.gmra.mrb[0].mxu0 %v1352
    %v1425 = vpop.f32.mrb[0].mxu0
    %v1426 = vadd.f32 %v1346, %v1425
    %v1427 = vpop.f32.mrb[0].mxu0
    %1428 = vdwg.mxu0
    %v1429 = vmax.f32 %v1421, 0.0
    %v1430 = vmax.f32 %v1426, 0.0
    %v1431 = vld [vmem:[%s7] sm:$0xff]
    %v1432 = vld [vmem:[%s7 + $0x8] sm:$0xff]
    %v1433 = vld [vmem:[%s7 + $0x10] sm:$0xff]
    %v1434 = vld [vmem:[%s7 + $0x18] sm:$0xff]
    %v1435 = vld [vmem:[%s7 + $0x20] sm:$0xff]
    %v1436 = vld [vmem:[%s7 + $0x28] sm:$0xff]
    %v1437 = vld [vmem:[%s7 + $0x30] sm:$0xff]
    %v1438 = vld [vmem:[%s7 + $0x38] sm:$0xff]
    %v1439 = vlaneseq
    %v1440 = vshrl.u32 %v1439, 7
    %v1441 = vsub.s32 0, %v1440
    %v1442 = vrot.slane %v46, %v1441
    %vm1443 = vcmask 523264
    %v1445 = vsel %vm1443, %v1429, 0
    %v1448 = vsel %vm1443, %v1430, 0
    %1450 = vmatprep.subr.mxu0 0.0
    %1451 = vmatpush1.msra.mxu0 %v1431
    %1452 = vmatprep.subr.mxu0 0.0
    %1453 = vmatpush1.msra.mxu0 %v1432
    %1454 = vmatprep.subr.mxu0 0.0
    %1455 = vmatpush1.msra.mxu0 %v1433
    %1456 = vmatprep.subr.mxu0 0.0
    %1457 = vmatpush1.msra.mxu0 %v1434
    %1458 = vmatprep.subr.mxu0 0.0
    %1459 = vmatpush1.msra.mxu0 %v1435
    %1460 = vmatprep.subr.mxu0 0.0
    %1461 = vmatpush1.msra.mxu0 %v1436
    %1462 = vmatprep.subr.mxu0 0.0
    %1463 = vmatpush1.msra.mxu0 %v1437
    %1464 = vmatprep.subr.mxu0 0.0
    %1465 = vmatpush1.msra.mxu0 %v1438
    %1466 = vmatprep.subr.mxu0 0.0
    %1467 = vmatpush1.msra.mxu0 0.0
    %1468 = vmatprep.subr.mxu0 0.0
    %1469 = vmatpush1.msra.mxu0 0.0
    %1470 = vmatprep.subr.mxu0 0.0
    %1471 = vmatpush1.msra.mxu0 0.0
    %1472 = vmatprep.subr.mxu0 0.0
    %1473 = vmatpush1.msra.mxu0 0.0
    %1474 = vmatprep.subr.mxu0 0.0
    %1475 = vmatpush1.msra.mxu0 0.0
    %1476 = vmatprep.subr.mxu0 0.0
    %1477 = vmatpush1.msra.mxu0 0.0
    %1478 = vmatprep.subr.mxu0 0.0
    %1479 = vmatpush1.msra.mxu0 0.0
    %1480 = vmatprep.subr.mxu0 0.0
    %1481 = vmatpush1.msra.mxu0 0.0
    %1482 = vmatprep.subr.mxu0 0.0
    %1483 = vmatpush1.msra.mxu0 0.0
    %1484 = vmatprep.subr.mxu0 0.0
    %1485 = vmatpush1.msra.mxu0 0.0
    %1486 = vmatprep.subr.mxu0 0.0
    %1487 = vmatpush1.msra.mxu0 0.0
    %1488 = vmatprep.subr.mxu0 0.0
    %1489 = vmatpush1.msra.mxu0 0.0
    %1490 = vmatprep.subr.mxu0 0.0
    %1491 = vmatpush1.msra.mxu0 0.0
    %1492 = vmatprep.subr.mxu0 0.0
    %1493 = vmatpush1.msra.mxu0 0.0
    %1494 = vmatprep.subr.mxu0 0.0
    %1495 = vmatpush1.msra.mxu0 0.0
    %1496 = vmatprep.subr.mxu0 0.0
    %1497 = vmatpush1.msra.mxu0 0.0
    %1498 = vmatprep.subr.mxu0 0.0
    %1499 = vmatpush1.msra.mxu0 0.0
    %1500 = vmatprep.subr.mxu0 0.0
    %1501 = vmatpush1.msra.mxu0 0.0
    %1502 = vmatprep.subr.mxu0 0.0
    %1503 = vmatpush1.msra.mxu0 0.0
    %1504 = vmatprep.subr.mxu0 0.0
    %1505 = vmatpush1.msra.mxu0 0.0
    %1506 = vmatprep.subr.mxu0 0.0
    %1507 = vmatpush1.msra.mxu0 0.0
    %1508 = vmatprep.subr.mxu0 0.0
    %1509 = vmatpush1.msra.mxu0 0.0
    %1510 = vmatprep.subr.mxu0 0.0
    %1511 = vmatpush1.msra.mxu0 0.0
    %1512 = vmatprep.subr.mxu0 0.0
    %1513 = vmatpush1.msra.mxu0 0.0
    %1514 = vmatprep.mubr.f32.mxu0 0.0
    %1515 = vmatmul.mubr.f32.gmra.mrb[0].mxu0 %v1445
    %v1516 = vpop.f32.mrb[0].mxu0
    %v1517 = vadd.f32 %v1442, %v1516
    %v1518 = vpop.f32.mrb[0].mxu0
    %1519 = vmatprep.mubr.f32.mxu0 0.0
    %1520 = vmatmul.mubr.f32.gmra.mrb[0].mxu0 %v1448
    %v1521 = vpop.f32.mrb[0].mxu0
    %v1522 = vadd.f32 %v1442, %v1521
    %v1523 = vpop.f32.mrb[0].mxu0
    %1524 = vdwg.mxu0
    %v1525 = vadd.f32 %v1335, %v1517
    %v1526 = vadd.f32 %v1336, %v1522
    %v1527 = vsel %vm60, %v1525, 0.0
    %1528 = vadd.xlane.f32.xlu0 %v1527
    %v1529 = vpop.xlane.xlu0 %1528
    %v1530 = vsel %vm60, %v1526, 0.0
    %1531 = vadd.xlane.f32.xlu0 %v1530
    %v1532 = vpop.xlane.xlu0 %1531
    %v1533 = vmul.f32 %v1529, %v1304
    %v1534 = vmul.f32 %v1532, %v1304
    %v1535 = vsub.f32 %v1525, %v1533
    %v1536 = vsub.f32 %v1526, %v1534
    %v1537 = vmul.f32 %v1535, %v1535
    %v1538 = vmul.f32 %v1536, %v1536
    %v1539 = vsel %vm60, %v1537, 0.0
    %1540 = vadd.xlane.f32.xlu0 %v1539
    %v1541 = vpop.xlane.xlu0 %1540
    %v1542 = vsel %vm60, %v1538, 0.0
    %1543 = vadd.xlane.f32.xlu0 %v1542
    %v1544 = vpop.xlane.xlu0 %1543
    %v1545 = vmul.f32 %v1541, %v1304
    %v1546 = vmul.f32 %v1544, %v1304
    %v1547 = vlaneseq
    %v1548 = vshrl.u32 %v1547, 7
    %v1549 = vsub.s32 0, %v1548
    %v1550 = vrot.slane %v47, %v1549
    %v1551 = vmul.f32 %v1550, %v1535
    %v1552 = vmul.f32 %v1550, %v1536
    %v1553 = vadd.f32 %v1545, 1e-06
    %v1554 = vadd.f32 %v1546, 1e-06
    %v1555 = vrsqrt.pop %v1553
    %v1556 = vrsqrt.pop %v1554
    %v1557 = vmul.f32 %v1551, %v1555
    %v1558 = vmul.f32 %v1552, %v1556
    %v1559 = vlaneseq
    %v1560 = vshrl.u32 %v1559, 7
    %v1561 = vsub.s32 0, %v1560
    %v1562 = vrot.slane %v48, %v1561
    %v1563 = vadd.f32 %v1557, %v1562
    %v1564 = vadd.f32 %v1558, %v1562
    %1565 = vst.msk [vmem:[#allocation2] sm:$0xff] %vm60, %v1563
    %1566 = vst.msk [vmem:[#allocation2 + $0x8] sm:$0xff] %vm60, %v1564
    // Predicated region
    $region38: #{tpu_custom_call.1} parent=1 // pred_check
      _
    $region39: #{tpu_custom_call.1} parent=1 // pred_check_branch
      %1568 = sbr.rel (0) target = $region41
    $region40: #{tpu_custom_call.1} parent=1 // pred_region
      %s1570 = ssub.s32 256, 256
      %1571 = vsyncadd [#allocation3], %s1570
      %s1572 = sshll.u32 [#allocation2], 4
      %s1573 = int_to_ptr.vmem [resolvable:$true] %s1572
      %1578 = dma.vmem_to_hbm [thread:$0]  %s1573, 256, %s9, [#allocation3], 128, 128, 8
    $region41: #{tpu_custom_call.1} parent=1 // pred_fallthru
      _
    // Predicated region
    $region42: #{tpu_custom_call.1} parent=1 // pred_check
      _
    $region43: #{tpu_custom_call.1} parent=1 // pred_check_branch
      %1580 = sbr.rel (0) target = $region45
    $region44: #{tpu_custom_call.1} parent=1 // pred_region
      %1581 = dma.done [#allocation3], 256
    $region45: #{tpu_custom_call.1} parent=1 // pred_fallthru
      _
    %1582 = vsyncpa [#allocation3], 1

</llo_original>
